<compile_context>
chip_gen: v7x
topology: tpu7x:2x2x1
jax: 0.10.0
libtpu: 0.0.40
codegen_flags: <defaults>
</compile_context>

<pallas_src>
import jax
import jax.numpy as jnp
import numpy as np
from jax.experimental import pallas as pl
from jax.experimental.pallas import tpu as pltpu


def _conv1x1_kernel(x_ref, w_ref, b_ref, o_ref):
    """One (batch, spatial-tile) grid step of a 1x1 conv.

    x_ref : (1, C_in,  TS)   input feature tile (native dtype)
    w_ref : (C_out, C_in)    1x1 conv weight (bf16)
    b_ref : (C_out, 1)       bias (f32)
    o_ref : (1, C_out, TS)   output tile
    """
    x = x_ref[0].astype(jnp.bfloat16)                      # single-pass MXU operand
    acc = jnp.dot(w_ref[...], x,                           # MXU: (C_out, TS), f32 acc
                  preferred_element_type=jnp.float32)
    acc = acc + b_ref[...]                                 # lane-broadcast f32 bias
    o_ref[0] = acc.astype(o_ref.dtype)


def _tpu_vmem_capacity_bytes():
    try:
        info = pltpu.get_tpu_info()
        return int(getattr(info, "vmem_capacity_bytes", 128 * 1024 * 1024))
    except Exception:
        return 128 * 1024 * 1024


def conv1x1_forward(feature, weight, bias, *, tile_s=None):
    """out[b, o, h, w] = sum_c weight[o, c] * feature[b, c, h, w] + bias[o].

    feature: (B, C_in, H, W); weight: (C_out, C_in); bias: (C_out,)
    Returns (B, C_out, H, W) in the feature dtype.
    """
    B, C_in, H, W = feature.shape
    C_out = weight.shape[0]
    HW = H * W
    in_bytes = jnp.dtype(feature.dtype).itemsize

    vmem_cap = _tpu_vmem_capacity_bytes()
    big_vmem = vmem_cap >= 96 * 1024 * 1024          # v5e/v6e: 128 MiB, v7x: 64 MiB
    vmem_limit = 64 * 1024 * 1024 if big_vmem else 44 * 1024 * 1024

    if tile_s is None:
        # Budget the double-buffered input activation stream.
        budget = (32 if big_vmem else 16) * 1024 * 1024
        tile_s = max(128, (budget // (2 * C_in * in_bytes)) // 128 * 128)
        tile_s = min(tile_s, 4096)

    if tile_s >= HW:
        tile_s = HW                                   # full-extent block (always legal)
    else:
        tile_s = max(128, (tile_s // 128) * 128)      # lane-aligned tile

    n_s = pl.cdiv(HW, tile_s)

    # v7x megacore balance: give both TensorCores at least one grid step.
    if B * n_s < 2 and HW >= 512:
        tile_s = ((HW + 1) // 2 + 127) // 128 * 128
        n_s = pl.cdiv(HW, tile_s)

    # No padding copy: reshape only (free).  The ragged final block (if any)
    # is handled by Pallas (masked stores; garbage tail input lanes only feed
    # output columns that are never stored).
    x = feature.reshape(B, C_in, HW)
    w = weight.reshape(C_out, C_in).astype(jnp.bfloat16)   # one-time 256-512 KiB cast
    bvec = bias.reshape(C_out, 1).astype(jnp.float32)

    # TODO(synk): pipeline_mode=pl.Buffered(1) on the constant weight/bias specs
    # would shave ~0.5 MiB of VMEM; skipped (negligible here, keeps lowering simple).
    out = pl.pallas_call(
        _conv1x1_kernel,
        out_shape=jax.ShapeDtypeStruct((B, C_out, HW), feature.dtype),
        grid_spec=pltpu.PrefetchScalarGridSpec(
            num_scalar_prefetch=0,
            grid=(B, n_s),
            in_specs=[
                pl.BlockSpec((1, C_in, tile_s), lambda b, s: (b, 0, s)),
                pl.BlockSpec((C_out, C_in), lambda b, s: (0, 0)),
                pl.BlockSpec((C_out, 1), lambda b, s: (0, 0)),
            ],
            out_specs=pl.BlockSpec((1, C_out, tile_s), lambda b, s: (b, 0, s)),
        ),
        compiler_params=pltpu.CompilerParams(
            # No cross-step reduction: both axes independent -> megacore-friendly.
            dimension_semantics=("parallel", "parallel"),
            vmem_limit_bytes=vmem_limit,
        ),
    )(x, w, bvec)

    return out.reshape(B, C_out, H, W)


def make_embed_1x1_params(key, in_channels, output_channels, dtype=jnp.float32):
    """theta/phi 1x1-conv params, init mirroring nn.Conv2d defaults (uniform +-1/sqrt(fan_in))."""
    k1, k2, k3, k4 = jax.random.split(key, 4)
    bound = 1.0 / float(np.sqrt(in_channels))
    theta_w = jax.random.uniform(k1, (output_channels, in_channels), dtype, -bound, bound)
    theta_b = jax.random.uniform(k2, (output_channels,), dtype, -bound, bound)
    phi_w = jax.random.uniform(k3, (output_channels, in_channels), dtype, -bound, bound)
    phi_b = jax.random.uniform(k4, (output_channels,), dtype, -bound, bound)
    return {"theta": (theta_w, theta_b), "phi": (phi_w, phi_b)}


def embed_1x1_forward(params, feature, func="phi"):
    """Mirrors embed_1x1.forward(feature, func)."""
    w, b = params[func]
    return conv1x1_forward(feature, w, b)


def embed_1x1_forward_both(params, feature):
    """Fused phi+theta on the same feature: one pass over the 2048-ch activation.

    Returns (phi_out, theta_out).  Halves HBM reads vs two separate calls and
    doubles MXU row fill (128 vs 64 output rows).
    """
    w_phi, b_phi = params["phi"]
    w_th, b_th = params["theta"]
    w = jnp.concatenate([w_phi, w_th], axis=0)
    b = jnp.concatenate([b_phi, b_th], axis=0)
    out = conv1x1_forward(feature, w, b)
    c = w_phi.shape[0]
    return out[:, :c], out[:, c:]


def _reference(feature, weight, bias):
    """Plain-JAX reference for the 1x1 conv (high-precision einsum)."""
    out = jnp.einsum(
        "oc,bchw->bohw",
        weight.astype(jnp.float32),
        feature.astype(jnp.float32),
        precision=jax.lax.Precision.HIGHEST,
    )
    return out + bias.astype(jnp.float32)[None, :, None, None]


if __name__ == "__main__":
    # Module config: in_channels=2048 (hardcoded in embed_1x1), small output_channels.
    in_channels = 2048
    output_channels = 64

    key = jax.random.PRNGKey(0)
    kp, kf1, kf2 = jax.random.split(key, 3)
    params = make_embed_1x1_params(kp, in_channels, output_channels)

    # Small deterministic inputs (BCHW like PyTorch).  The second shape has
    # H*W not a multiple of 128 to exercise the ragged/masked-store path.
    feat_a = jax.random.normal(kf1, (2, in_channels, 16, 16), dtype=jnp.float32)
    feat_b = jax.random.normal(kf2, (2, in_channels, 16, 15), dtype=jnp.float32)

    # TODO(synk): PyTorch runs the conv in fp32 with full fp32 accumulation; the
    # single-pass bf16 MXU matmul differs at the ~1e-3 level (tolerance below).
    def check(out, ref, tol=3e-2):
        np.testing.assert_allclose(np.asarray(out, dtype=np.float32),
                                   np.asarray(ref, dtype=np.float32),
                                   rtol=tol, atol=tol)

    # phi / theta, default tiling (single full-extent spatial block).
    for feat in (feat_a, feat_b):
        for func in ("phi", "theta"):
            out = jax.block_until_ready(embed_1x1_forward(params, feat, func=func))
            w, b = params[func]
            check(out, _reference(feat, w, b))

    # Multi-tile path including a ragged (masked-store) final block, no pad copy.
    w, b = params["phi"]
    out = jax.block_until_ready(conv1x1_forward(feat_b, w, b, tile_s=128))
    check(out, _reference(feat_b, w, b))

    # bf16 activations stream straight through (halved HBM reads, no wrapper cast).
    feat_bf16 = feat_a.astype(jnp.bfloat16)
    out = jax.block_until_ready(embed_1x1_forward(params, feat_bf16, func="theta"))
    w, b = params["theta"]
    check(out, _reference(feat_bf16, w, b))

    # Fused phi+theta: one streamed pass over the feature for both projections.
    phi_out, theta_out = embed_1x1_forward_both(params, feat_a)
    jax.block_until_ready((phi_out, theta_out))
    check(phi_out, _reference(feat_a, *params["phi"]))
    check(theta_out, _reference(feat_a, *params["theta"]))

    print("KERNEL_OK")
</pallas_src>

<mosaic_0001>
module attributes {stable_mosaic.version = 11 : i64} {
  func.func @_conv1x1_kernel(%arg0: i32, %arg1: i32, %arg2: memref<1x2048x256xf32, #tpu.memory_space<vmem>>, %arg3: memref<64x2048xbf16, #tpu.memory_space<vmem>>, %arg4: memref<64x1xf32, #tpu.memory_space<vmem>>, %arg5: memref<1x64x256xf32, #tpu.memory_space<vmem>>) attributes {dimension_semantics = [#tpu.dimension_semantics<parallel>, #tpu.dimension_semantics<parallel>], iteration_bounds = array<i64: 2, 1>, scalar_prefetch = 0 : i64, scratch_operands = 0 : i64, tpu.core_type = #tpu.core_type<tc>, window_params = [{transform_indices = @transform_0, window_bounds = array<i64: 1, 2048, 256>}, {pipeline_mode = #tpu.pipeline_mode<synchronous>, transform_indices = @transform_1, window_bounds = array<i64: 64, 2048>}, {pipeline_mode = #tpu.pipeline_mode<synchronous>, transform_indices = @transform_2, window_bounds = array<i64: 64, 1>}, {transform_indices = @transform_3, window_bounds = array<i64: 1, 64, 256>}]} {
    %c0 = arith.constant 0 : index
    %c0_0 = arith.constant 0 : index
    %c0_1 = arith.constant 0 : index
    %0 = vector.load %arg2[%c0, %c0_0, %c0_1] : memref<1x2048x256xf32, #tpu.memory_space<vmem>>, vector<1x2048x256xf32>
    %1 = vector.shape_cast %0 : vector<1x2048x256xf32> to vector<2048x256xf32>
    %2 = arith.truncf %1 : vector<2048x256xf32> to vector<2048x256xbf16>
    %c0_2 = arith.constant 0 : index
    %c0_3 = arith.constant 0 : index
    %3 = vector.load %arg3[%c0_2, %c0_3] : memref<64x2048xbf16, #tpu.memory_space<vmem>>, vector<64x2048xbf16>
    %cst = arith.constant dense<0.000000e+00> : vector<64x256xf32>
    %4 = tpu.matmul %3, %2, %cst {dimension_numbers = #tpu.dot_dimension_numbers<[1], [0], [0], [1], [0, 0, 1, 1], [], []>} : vector<64x2048xbf16>, vector<2048x256xbf16>, vector<64x256xf32> -> vector<64x256xf32>
    %c0_4 = arith.constant 0 : index
    %c0_5 = arith.constant 0 : index
    %5 = vector.load %arg4[%c0_4, %c0_5] : memref<64x1xf32, #tpu.memory_space<vmem>>, vector<64x1xf32>
    %6 = vector.broadcast %5 : vector<64x1xf32> to vector<64x256xf32>
    %7 = arith.addf %4, %6 : vector<64x256xf32>
    %c0_6 = arith.constant 0 : index
    %c0_7 = arith.constant 0 : index
    %c0_8 = arith.constant 0 : index
    %8 = vector.load %arg5[%c0_6, %c0_7, %c0_8] : memref<1x64x256xf32, #tpu.memory_space<vmem>>, vector<1x64x256xf32>
    %9 = vector.shape_cast %8 : vector<1x64x256xf32> to vector<64x256xf32>
    %10 = vector.shape_cast %7 : vector<64x256xf32> to vector<1x64x256xf32>
    tpu.vector_store %arg5[%c0_6, %c0_7, %c0_8], %10 {strides = array<i32>} : memref<1x64x256xf32, #tpu.memory_space<vmem>>, vector<1x64x256xf32>,
    return
  }
  func.func @transform_0(%arg0: i32, %arg1: i32) -> (i32, i32, i32) {
    %c0_i32 = arith.constant 0 : i32
    %c0_i32_0 = arith.constant 0 : i32
    return %arg0, %c0_i32, %arg1 : i32, i32, i32
  }
  func.func @transform_1(%arg0: i32, %arg1: i32) -> (i32, i32) {
    %c0_i32 = arith.constant 0 : i32
    %c0_i32_0 = arith.constant 0 : i32
    %c0_i32_1 = arith.constant 0 : i32
    return %c0_i32, %c0_i32_0 : i32, i32
  }
  func.func @transform_2(%arg0: i32, %arg1: i32) -> (i32, i32) {
    %c0_i32 = arith.constant 0 : i32
    %c0_i32_0 = arith.constant 0 : i32
    %c0_i32_1 = arith.constant 0 : i32
    return %c0_i32, %c0_i32_0 : i32, i32
  }
  func.func @transform_3(%arg0: i32, %arg1: i32) -> (i32, i32, i32) {
    %c0_i32 = arith.constant 0 : i32
    %c0_i32_0 = arith.constant 0 : i32
    return %arg0, %c0_i32, %arg1 : i32, i32, i32
  }
}

</mosaic_0001>

<llo_original>
// kernel: tpu_custom_call.1
$region0: #{tpu_custom_call.1}
  #allocation0 [shape = 'u32[]', space=smem, size = 0x4, offset = 0x4, fixed_abs, tag = 'smem constant byte address 0x4 - core index']
  #allocation1 [shape = 'u32[144,128]{1,0:T(1,128)}', space=vmem, size = 0x12000, scoped, tag = 'internal scratch']
  %s0 = inlined_call_operand.hbm [shape: f32[2,2048,256], index: 0, kind: input, shape index: {}]
  %s1 = inlined_call_operand.hbm [shape: bf16[64,2048], index: 1, kind: input, shape index: {}]
  %s2 = inlined_call_operand.hbm [shape: f32[64,1], index: 2, kind: input, shape index: {}]
  %s3 = inlined_call_operand.hbm [shape: f32[2,64,256], index: 3, kind: output, shape index: {}]
  %s4 = sld [smem:[#allocation0]]
  $region57: #{tpu_custom_call.1} parent=0
    _
  %s6 = ssub.s32 1, %s4
  %s7 = scalar_select 0, %s6, %s4
  $region1: #{tpu_custom_call.1} parent=0
    #allocation2 [shape = 'u8[4194304]{0}', space=vmem, size = 0x400000, scoped, tag = 'input window, operand 0']
    #allocation3 [shape = 's32[2]{0}', space=sflag, size = 0x8, scoped, tag = 'scoped memory for tpu_custom_call.1']
    #allocation4 [shape = 's32[2]{0}', space=sflag, size = 0x8, scoped, tag = 'scoped memory for tpu_custom_call.1']
    #allocation5 [shape = 'u8[262144]{0}', space=vmem, size = 0x40000, scoped, tag = 'input window, operand 1, single buffered']
    #allocation6 [shape = 's32[1]{0}', space=sflag, size = 0x4, scoped, tag = 'scoped memory for tpu_custom_call.1']
    #allocation7 [shape = 'u8[32768]{0}', space=vmem, size = 0x8000, scoped, tag = 'input window, operand 2, single buffered']
    #allocation8 [shape = 'u8[131072]{0}', space=vmem, size = 0x20000, scoped, tag = 'output window, operand 0']
    %8 = vsyncpa [#allocation3], 0
    %s9 = scalar_lea.sflag [#allocation3], 1
    %10 = vsyncpa %s9, 0
    %11 = vsyncpa [#allocation6], 0
    %12 = vsyncpa [#allocation4], 0
    %s13 = scalar_lea.sflag [#allocation4], 1
    %14 = vsyncpa %s13, 0
    loop: start=0, step=1, limit=4
    $region2: #{tpu_custom_call.1} parent=1 // loop_pre_header
      _
    $region3: #{tpu_custom_call.1} parent=1 // loop_header
      %s16 = sphi 0, %s20
      %p17 = scmp.ge.s32.totalorder %s16, 4
      %s23 = sphi 0, %s35
      %s24 = sphi 0, %s31
      %s25 = sphi 0, %s23
      %s26 = sphi 0, %s24
      %s27 = sphi 0, %s25
      %s28 = sphi 0, %s26
      %s40 = sphi 0, %s42
      %s43 = sphi 0, %s40
      %s44 = sphi 0, %s43
      %s60 = sphi 0, %s44
      %s64 = sphi 0, %s64
      %s66 = sphi 0, %s64
      %s67 = sphi 0, %s66
      %s81 = sphi 0, %s67
      %s85 = sphi 0, %s85
      %s87 = sphi 0, %s85
      %s88 = sphi 0, %s87
      %s102 = sphi 0, %s88
      %s110 = sphi 0, %s112
      %s113 = sphi 0, %s110
      %s114 = sphi 0, %s113
      %s130 = sphi 0, %s114
    $region4: #{tpu_custom_call.1} parent=1 // loop_header_branch
      %19 = sbr.rel (%p17) target = $region8
    $region5: #{tpu_custom_call.1} parent=1 // loop_body
      %s21 = ssub.s32 %s16, 1
      %s22 = ssub.s32 %s16, 2
      %s29 = sadd.s32 1, %s24
      %p30 = scmp.ge.s32.totalorder %s29, 1
      %s31 = scalar_select %p30, 0, %s29
      %s32 = sadd.s32 1, %s23
      %s33 = scalar_select %p30, %s32, %s23
      %p34 = scmp.ge.s32.totalorder %s33, 2
      %s35 = scalar_select %p34, 0, %s33
      %s36 = ssub.s32 %s23, %s35
      %s37 = ssub.s32 %s24, %s31
      %s38 = sor.u32 %s36, %s37
      %p39 = scmp.eq.s32.totalorder %s38, 0
      %s41 = sadd.s32 %s40, 1
      %s42 = scalar_select %p39, %s40, %s41
      %p45 = pneg %p39
      %p46 = scmp.eq.s32.totalorder %s16, 1
      %p47 = por %p45, %p46
      %p48 = scmp.ne.s32.totalorder %s40, %s43
      %p49 = scmp.eq.s32.totalorder %s16, 0
      %p50 = por %p48, %p49
      %p51 = scmp.ne.s32.totalorder %s40, %s43
      %p52 = scmp.eq.s32.totalorder %s21, 1
      %p53 = por %p51, %p52
      %p54 = scmp.ne.s32.totalorder %s43, %s44
      %p55 = scmp.eq.s32.totalorder %s21, 0
      %p56 = por %p54, %p55
      %p57 = scmp.ne.s32.totalorder %s43, %s44
      %p58 = scmp.eq.s32.totalorder %s22, 1
      %p59 = por %p57, %p58
      %p61 = scmp.ne.s32.totalorder %s44, %s60
      %p62 = scmp.eq.s32.totalorder %s22, 0
      %p63 = por %p61, %p62
      %s65 = sadd.s32 %s64, 1
      %p68 = scmp.eq.s32.totalorder %s16, 1
      %p69 = scmp.ne.s32.totalorder %s64, %s66
      %p70 = scmp.eq.s32.totalorder %s16, 0
      %p71 = por %p69, %p70
      %p72 = scmp.ne.s32.totalorder %s64, %s66
      %p73 = scmp.eq.s32.totalorder %s21, 1
      %p74 = por %p72, %p73
      %p75 = scmp.ne.s32.totalorder %s66, %s67
      %p76 = scmp.eq.s32.totalorder %s21, 0
      %p77 = por %p75, %p76
      %p78 = scmp.ne.s32.totalorder %s66, %s67
      %p79 = scmp.eq.s32.totalorder %s22, 1
      %p80 = por %p78, %p79
      %p82 = scmp.ne.s32.totalorder %s67, %s81
      %p83 = scmp.eq.s32.totalorder %s22, 0
      %p84 = por %p82, %p83
      %s86 = sadd.s32 %s85, 1
      %p89 = scmp.eq.s32.totalorder %s16, 1
      %p90 = scmp.ne.s32.totalorder %s85, %s87
      %p91 = scmp.eq.s32.totalorder %s16, 0
      %p92 = por %p90, %p91
      %p93 = scmp.ne.s32.totalorder %s85, %s87
      %p94 = scmp.eq.s32.totalorder %s21, 1
      %p95 = por %p93, %p94
      %p96 = scmp.ne.s32.totalorder %s87, %s88
      %p97 = scmp.eq.s32.totalorder %s21, 0
      %p98 = por %p96, %p97
      %p99 = scmp.ne.s32.totalorder %s87, %s88
      %p100 = scmp.eq.s32.totalorder %s22, 1
      %p101 = por %p99, %p100
      %p103 = scmp.ne.s32.totalorder %s88, %s102
      %p104 = scmp.eq.s32.totalorder %s22, 0
      %p105 = por %p103, %p104
      %s106 = ssub.s32 %s23, %s35
      %s107 = ssub.s32 %s24, %s31
      %s108 = sor.u32 %s106, %s107
      %p109 = scmp.eq.s32.totalorder %s108, 0
      %s111 = sadd.s32 %s110, 1
      %s112 = scalar_select %p109, %s110, %s111
      %p115 = pneg %p109
      %p116 = scmp.eq.s32.totalorder %s16, 1
      %p117 = por %p115, %p116
      %p118 = scmp.ne.s32.totalorder %s110, %s113
      %p119 = scmp.eq.s32.totalorder %s16, 0
      %p120 = por %p118, %p119
      %p121 = scmp.ne.s32.totalorder %s110, %s113
      %p122 = scmp.eq.s32.totalorder %s21, 1
      %p123 = por %p121, %p122
      %p124 = scmp.ne.s32.totalorder %s113, %s114
      %p125 = scmp.eq.s32.totalorder %s21, 0
      %p126 = por %p124, %p125
      %p127 = scmp.ne.s32.totalorder %s113, %s114
      %p128 = scmp.eq.s32.totalorder %s22, 1
      %p129 = por %p127, %p128
      %p131 = scmp.ne.s32.totalorder %s114, %s130
      %p132 = scmp.eq.s32.totalorder %s22, 0
      %p133 = por %p131, %p132
      %p134 = scmp.le.s32.totalorder 1, %s16
      %p135 = scmp.lt.s32.totalorder %s16, 3
      %p136 = pnand %p134, %p135
      %p137 = pneg %p136
      // Predicated region
      $region9: #{tpu_custom_call.1} parent=5 // pred_check
        _
      $region10: #{tpu_custom_call.1} parent=5 // pred_check_branch
        %139 = sbr.rel (%p136) target = $region12
      $region11: #{tpu_custom_call.1} parent=5 // pred_region
        %s140 = ssub.s32 %s16, 1
        // Predicated region
        $region13: #{tpu_custom_call.1} parent=11 // pred_check
          %p141 = pneg %p77
        $region14: #{tpu_custom_call.1} parent=11 // pred_check_branch
          %143 = sbr.rel (%p141) target = $region16
        $region15: #{tpu_custom_call.1} parent=11 // pred_region
          %s145 = ssub.s32 8192, 8192
          %146 = vsyncadd [#allocation6], %s145
          %s147 = sshll.u32 [#allocation5], 4
          %s148 = int_to_ptr.vmem [resolvable:$true] %s147
          %153 = dma.hbm_to_vmem [thread:$0]  %s1, 8192, %s148, [#allocation6], 1024, 1024, 64
        $region16: #{tpu_custom_call.1} parent=11 // pred_fallthru
          _
        // Predicated region
        $region17: #{tpu_custom_call.1} parent=11 // pred_check
          %p154 = pneg %p98
        $region18: #{tpu_custom_call.1} parent=11 // pred_check_branch
          %156 = sbr.rel (%p154) target = $region20
        $region19: #{tpu_custom_call.1} parent=11 // pred_region
          %s158 = ssub.s32 1024, 1024
          %159 = vsyncadd [#allocation6], %s158
          %s160 = sshll.u32 [#allocation7], 4
          %s161 = int_to_ptr.vmem [resolvable:$true] %s160
          %166 = dma.hbm_to_vmem [thread:$0]  %s2, 1024, %s161, [#allocation6], 128, 128, 8
        $region20: #{tpu_custom_call.1} parent=11 // pred_fallthru
          _
      $region12: #{tpu_custom_call.1} parent=5 // pred_fallthru
        _
      %p167 = scmp.lt.s32.totalorder %s16, 2
      // Predicated region
      $region21: #{tpu_custom_call.1} parent=5 // pred_check
        %p168 = pneg %p167
      $region22: #{tpu_custom_call.1} parent=5 // pred_check_branch
        %170 = sbr.rel (%p168) target = $region24
      $region23: #{tpu_custom_call.1} parent=5 // pred_region
        // Predicated region
        $region25: #{tpu_custom_call.1} parent=23 // pred_check
          %p171 = pneg %p50
        $region26: #{tpu_custom_call.1} parent=23 // pred_check_branch
          %173 = sbr.rel (%p171) target = $region28
        $region27: #{tpu_custom_call.1} parent=23 // pred_region
          %s174 = sand.u32 %s40, 1
          %s175 = scalar_lea.sflag [#allocation3], %s174
          %s176 = sand.u32 %s40, 1
          %s177 = smul.addr %s176, 4096
          %s178 = scalar_lea.vmem [#allocation2], %s177
          %s179 = smul.u32 2, %s24
          %s181 = ssub.s32 65536, 65536
          %182 = vsyncadd %s175, %s181
          %s183 = smul.addr %s23, 512
          %s184 = sadd.s32 %s179, %s183
          %s185 = smul.addr %s184, 128
          %s186 = scalar_lea.hbm %s0, %s185
          %s187 = sshll.u32 %s178, 4
          %s188 = int_to_ptr.vmem [resolvable:$true] %s187
          %193 = dma.hbm_to_vmem [thread:$0]  %s186, 65536, %s188, %s175, 256, 256, 16
        $region28: #{tpu_custom_call.1} parent=23 // pred_fallthru
          _
      $region24: #{tpu_custom_call.1} parent=5 // pred_fallthru
        _
      %p194 = scmp.le.s32.totalorder 1, %s16
      %p195 = scmp.lt.s32.totalorder %s16, 3
      %p196 = pnand %p194, %p195
      %p197 = pneg %p196
      // Predicated region
      $region29: #{tpu_custom_call.1} parent=5 // pred_check
        _
      $region30: #{tpu_custom_call.1} parent=5 // pred_check_branch
        %199 = sbr.rel (%p196) target = $region32
      $region31: #{tpu_custom_call.1} parent=5 // pred_region
        %s200 = ssub.s32 %s16, 1
        %s201 = sand.u32 %s43, 1
        %s202 = scalar_lea.sflag [#allocation3], %s201
        %s203 = sand.u32 %s43, 1
        %s204 = smul.addr %s203, 4096
        %s205 = scalar_lea.vmem [#allocation2], %s204
        // Predicated region
        $region33: #{tpu_custom_call.1} parent=31 // pred_check
          %p206 = pneg %p56
        $region34: #{tpu_custom_call.1} parent=31 // pred_check_branch
          %208 = sbr.rel (%p206) target = $region36
        $region35: #{tpu_custom_call.1} parent=31 // pred_region
          %209 = dma.done %s202, 65536
        $region36: #{tpu_custom_call.1} parent=31 // pred_fallthru
          _
        // Predicated region
        $region37: #{tpu_custom_call.1} parent=31 // pred_check
          %p210 = pneg %p77
        $region38: #{tpu_custom_call.1} parent=31 // pred_check_branch
          %212 = sbr.rel (%p210) target = $region40
        $region39: #{tpu_custom_call.1} parent=31 // pred_region
          %213 = dma.done [#allocation6], 8192
        $region40: #{tpu_custom_call.1} parent=31 // pred_fallthru
          _
        // Predicated region
        $region41: #{tpu_custom_call.1} parent=31 // pred_check
          %p214 = pneg %p98
        $region42: #{tpu_custom_call.1} parent=31 // pred_check_branch
          %216 = sbr.rel (%p214) target = $region44
        $region43: #{tpu_custom_call.1} parent=31 // pred_region
          %217 = dma.done [#allocation6], 1024
        $region44: #{tpu_custom_call.1} parent=31 // pred_fallthru
          _
        %s218 = sand.u32 %s43, 1
        %s219 = scalar_lea.sflag [#allocation3], %s218
        %s220 = sand.u32 %s43, 1
        %s221 = smul.addr %s220, 4096
        %s222 = scalar_lea.vmem [#allocation2], %s221
        %p223 = pneg %p56
        %p224 = pneg %p53
        %p225 = pneg %p77
        %p226 = pneg %p74
        %p227 = pneg %p98
        %p228 = pneg %p95
        %p229 = pneg %p126
        %p230 = pneg %p123
        %s231 = sand.u32 %s113, 1
        %s232 = scalar_lea.sflag [#allocation4], %s231
        %s233 = sand.u32 %s113, 1
        %s234 = smul.addr %s233, 128
        %s235 = scalar_lea.vmem [#allocation8], %s234
        %s236 = smul.u32 2, %s26
        %s237 = smul.u32 2, %s26
        %v238 = vld [vmem:[%s205] sm:$0xff]
        %v239 = vld [vmem:[%s205 + $0x8] sm:$0xff]
        %v240 = vld [vmem:[%s205 + $0x10] sm:$0xff]
        %v241 = vld [vmem:[%s205 + $0x18] sm:$0xff]
        %v242 = vld [vmem:[%s205 + $0x20] sm:$0xff]
        %v243 = vld [vmem:[%s205 + $0x28] sm:$0xff]
        %v244 = vld [vmem:[%s205 + $0x30] sm:$0xff]
        %v245 = vld [vmem:[%s205 + $0x38] sm:$0xff]
        %v246 = vld [vmem:[%s205 + $0x40] sm:$0xff]
        %v247 = vld [vmem:[%s205 + $0x48] sm:$0xff]
        %v248 = vld [vmem:[%s205 + $0x50] sm:$0xff]
        %v249 = vld [vmem:[%s205 + $0x58] sm:$0xff]
        %v250 = vld [vmem:[%s205 + $0x60] sm:$0xff]
        %v251 = vld [vmem:[%s205 + $0x68] sm:$0xff]
        %v252 = vld [vmem:[%s205 + $0x70] sm:$0xff]
        %v253 = vld [vmem:[%s205 + $0x78] sm:$0xff]
        %v254 = vld [vmem:[%s205 + $0x80] sm:$0xff]
        %v255 = vld [vmem:[%s205 + $0x88] sm:$0xff]
        %v256 = vld [vmem:[%s205 + $0x90] sm:$0xff]
        %v257 = vld [vmem:[%s205 + $0x98] sm:$0xff]
        %v258 = vld [vmem:[%s205 + $0xa0] sm:$0xff]
        %v259 = vld [vmem:[%s205 + $0xa8] sm:$0xff]
        %v260 = vld [vmem:[%s205 + $0xb0] sm:$0xff]
        %v261 = vld [vmem:[%s205 + $0xb8] sm:$0xff]
        %v262 = vld [vmem:[%s205 + $0xc0] sm:$0xff]
        %v263 = vld [vmem:[%s205 + $0xc8] sm:$0xff]
        %v264 = vld [vmem:[%s205 + $0xd0] sm:$0xff]
        %v265 = vld [vmem:[%s205 + $0xd8] sm:$0xff]
        %v266 = vld [vmem:[%s205 + $0xe0] sm:$0xff]
        %v267 = vld [vmem:[%s205 + $0xe8] sm:$0xff]
        %v268 = vld [vmem:[%s205 + $0xf0] sm:$0xff]
        %v269 = vld [vmem:[%s205 + $0xf8] sm:$0xff]
        %v270 = vld [vmem:[%s205 + $0x100] sm:$0xff]
        %v271 = vld [vmem:[%s205 + $0x108] sm:$0xff]
        %v272 = vld [vmem:[%s205 + $0x110] sm:$0xff]
        %v273 = vld [vmem:[%s205 + $0x118] sm:$0xff]
        %v274 = vld [vmem:[%s205 + $0x120] sm:$0xff]
        %v275 = vld [vmem:[%s205 + $0x128] sm:$0xff]
        %v276 = vld [vmem:[%s205 + $0x130] sm:$0xff]
        %v277 = vld [vmem:[%s205 + $0x138] sm:$0xff]
        %v278 = vld [vmem:[%s205 + $0x140] sm:$0xff]
        %v279 = vld [vmem:[%s205 + $0x148] sm:$0xff]
        %v280 = vld [vmem:[%s205 + $0x150] sm:$0xff]
        %v281 = vld [vmem:[%s205 + $0x158] sm:$0xff]
        %v282 = vld [vmem:[%s205 + $0x160] sm:$0xff]
        %v283 = vld [vmem:[%s205 + $0x168] sm:$0xff]
        %v284 = vld [vmem:[%s205 + $0x170] sm:$0xff]
        %v285 = vld [vmem:[%s205 + $0x178] sm:$0xff]
        %v286 = vld [vmem:[%s205 + $0x180] sm:$0xff]
        %v287 = vld [vmem:[%s205 + $0x188] sm:$0xff]
        %v288 = vld [vmem:[%s205 + $0x190] sm:$0xff]
        %v289 = vld [vmem:[%s205 + $0x198] sm:$0xff]
        %v290 = vld [vmem:[%s205 + $0x1a0] sm:$0xff]
        %v291 = vld [vmem:[%s205 + $0x1a8] sm:$0xff]
        %v292 = vld [vmem:[%s205 + $0x1b0] sm:$0xff]
        %v293 = vld [vmem:[%s205 + $0x1b8] sm:$0xff]
        %v294 = vld [vmem:[%s205 + $0x1c0] sm:$0xff]
        %v295 = vld [vmem:[%s205 + $0x1c8] sm:$0xff]
        %v296 = vld [vmem:[%s205 + $0x1d0] sm:$0xff]
        %v297 = vld [vmem:[%s205 + $0x1d8] sm:$0xff]
        %v298 = vld [vmem:[%s205 + $0x1e0] sm:$0xff]
        %v299 = vld [vmem:[%s205 + $0x1e8] sm:$0xff]
        %v300 = vld [vmem:[%s205 + $0x1f0] sm:$0xff]
        %v301 = vld [vmem:[%s205 + $0x1f8] sm:$0xff]
        %v302 = vld [vmem:[%s205 + $0x200] sm:$0xff]
        %v303 = vld [vmem:[%s205 + $0x208] sm:$0xff]
        %v304 = vld [vmem:[%s205 + $0x210] sm:$0xff]
        %v305 = vld [vmem:[%s205 + $0x218] sm:$0xff]
        %v306 = vld [vmem:[%s205 + $0x220] sm:$0xff]
        %v307 = vld [vmem:[%s205 + $0x228] sm:$0xff]
        %v308 = vld [vmem:[%s205 + $0x230] sm:$0xff]
        %v309 = vld [vmem:[%s205 + $0x238] sm:$0xff]
        %v310 = vld [vmem:[%s205 + $0x240] sm:$0xff]
        %v311 = vld [vmem:[%s205 + $0x248] sm:$0xff]
        %v312 = vld [vmem:[%s205 + $0x250] sm:$0xff]
        %v313 = vld [vmem:[%s205 + $0x258] sm:$0xff]
        %v314 = vld [vmem:[%s205 + $0x260] sm:$0xff]
        %v315 = vld [vmem:[%s205 + $0x268] sm:$0xff]
        %v316 = vld [vmem:[%s205 + $0x270] sm:$0xff]
        %v317 = vld [vmem:[%s205 + $0x278] sm:$0xff]
        %v318 = vld [vmem:[%s205 + $0x280] sm:$0xff]
        %v319 = vld [vmem:[%s205 + $0x288] sm:$0xff]
        %v320 = vld [vmem:[%s205 + $0x290] sm:$0xff]
        %v321 = vld [vmem:[%s205 + $0x298] sm:$0xff]
        %v322 = vld [vmem:[%s205 + $0x2a0] sm:$0xff]
        %v323 = vld [vmem:[%s205 + $0x2a8] sm:$0xff]
        %v324 = vld [vmem:[%s205 + $0x2b0] sm:$0xff]
        %v325 = vld [vmem:[%s205 + $0x2b8] sm:$0xff]
        %v326 = vld [vmem:[%s205 + $0x2c0] sm:$0xff]
        %v327 = vld [vmem:[%s205 + $0x2c8] sm:$0xff]
        %v328 = vld [vmem:[%s205 + $0x2d0] sm:$0xff]
        %v329 = vld [vmem:[%s205 + $0x2d8] sm:$0xff]
        %v330 = vld [vmem:[%s205 + $0x2e0] sm:$0xff]
        %v331 = vld [vmem:[%s205 + $0x2e8] sm:$0xff]
        %v332 = vld [vmem:[%s205 + $0x2f0] sm:$0xff]
        %v333 = vld [vmem:[%s205 + $0x2f8] sm:$0xff]
        %v334 = vld [vmem:[%s205 + $0x300] sm:$0xff]
        %v335 = vld [vmem:[%s205 + $0x308] sm:$0xff]
        %v336 = vld [vmem:[%s205 + $0x310] sm:$0xff]
        %v337 = vld [vmem:[%s205 + $0x318] sm:$0xff]
        %v338 = vld [vmem:[%s205 + $0x320] sm:$0xff]
        %v339 = vld [vmem:[%s205 + $0x328] sm:$0xff]
        %v340 = vld [vmem:[%s205 + $0x330] sm:$0xff]
        %v341 = vld [vmem:[%s205 + $0x338] sm:$0xff]
        %v342 = vld [vmem:[%s205 + $0x340] sm:$0xff]
        %v343 = vld [vmem:[%s205 + $0x348] sm:$0xff]
        %v344 = vld [vmem:[%s205 + $0x350] sm:$0xff]
        %v345 = vld [vmem:[%s205 + $0x358] sm:$0xff]
        %v346 = vld [vmem:[%s205 + $0x360] sm:$0xff]
        %v347 = vld [vmem:[%s205 + $0x368] sm:$0xff]
        %v348 = vld [vmem:[%s205 + $0x370] sm:$0xff]
        %v349 = vld [vmem:[%s205 + $0x378] sm:$0xff]
        %v350 = vld [vmem:[%s205 + $0x380] sm:$0xff]
        %v351 = vld [vmem:[%s205 + $0x388] sm:$0xff]
        %v352 = vld [vmem:[%s205 + $0x390] sm:$0xff]
        %v353 = vld [vmem:[%s205 + $0x398] sm:$0xff]
        %v354 = vld [vmem:[%s205 + $0x3a0] sm:$0xff]
        %v355 = vld [vmem:[%s205 + $0x3a8] sm:$0xff]
        %v356 = vld [vmem:[%s205 + $0x3b0] sm:$0xff]
        %v357 = vld [vmem:[%s205 + $0x3b8] sm:$0xff]
        %v358 = vld [vmem:[%s205 + $0x3c0] sm:$0xff]
        %v359 = vld [vmem:[%s205 + $0x3c8] sm:$0xff]
        %v360 = vld [vmem:[%s205 + $0x3d0] sm:$0xff]
        %v361 = vld [vmem:[%s205 + $0x3d8] sm:$0xff]
        %v362 = vld [vmem:[%s205 + $0x3e0] sm:$0xff]
        %v363 = vld [vmem:[%s205 + $0x3e8] sm:$0xff]
        %v364 = vld [vmem:[%s205 + $0x3f0] sm:$0xff]
        %v365 = vld [vmem:[%s205 + $0x3f8] sm:$0xff]
        %v366 = vld [vmem:[%s205 + $0x400] sm:$0xff]
        %v367 = vld [vmem:[%s205 + $0x408] sm:$0xff]
        %v368 = vld [vmem:[%s205 + $0x410] sm:$0xff]
        %v369 = vld [vmem:[%s205 + $0x418] sm:$0xff]
        %v370 = vld [vmem:[%s205 + $0x420] sm:$0xff]
        %v371 = vld [vmem:[%s205 + $0x428] sm:$0xff]
        %v372 = vld [vmem:[%s205 + $0x430] sm:$0xff]
        %v373 = vld [vmem:[%s205 + $0x438] sm:$0xff]
        %v374 = vld [vmem:[%s205 + $0x440] sm:$0xff]
        %v375 = vld [vmem:[%s205 + $0x448] sm:$0xff]
        %v376 = vld [vmem:[%s205 + $0x450] sm:$0xff]
        %v377 = vld [vmem:[%s205 + $0x458] sm:$0xff]
        %v378 = vld [vmem:[%s205 + $0x460] sm:$0xff]
        %v379 = vld [vmem:[%s205 + $0x468] sm:$0xff]
        %v380 = vld [vmem:[%s205 + $0x470] sm:$0xff]
        %v381 = vld [vmem:[%s205 + $0x478] sm:$0xff]
        %v382 = vld [vmem:[%s205 + $0x480] sm:$0xff]
        %v383 = vld [vmem:[%s205 + $0x488] sm:$0xff]
        %v384 = vld [vmem:[%s205 + $0x490] sm:$0xff]
        %v385 = vld [vmem:[%s205 + $0x498] sm:$0xff]
        %v386 = vld [vmem:[%s205 + $0x4a0] sm:$0xff]
        %v387 = vld [vmem:[%s205 + $0x4a8] sm:$0xff]
        %v388 = vld [vmem:[%s205 + $0x4b0] sm:$0xff]
        %v389 = vld [vmem:[%s205 + $0x4b8] sm:$0xff]
        %v390 = vld [vmem:[%s205 + $0x4c0] sm:$0xff]
        %v391 = vld [vmem:[%s205 + $0x4c8] sm:$0xff]
        %v392 = vld [vmem:[%s205 + $0x4d0] sm:$0xff]
        %v393 = vld [vmem:[%s205 + $0x4d8] sm:$0xff]
        %v394 = vld [vmem:[%s205 + $0x4e0] sm:$0xff]
        %v395 = vld [vmem:[%s205 + $0x4e8] sm:$0xff]
        %v396 = vld [vmem:[%s205 + $0x4f0] sm:$0xff]
        %v397 = vld [vmem:[%s205 + $0x4f8] sm:$0xff]
        %v398 = vld [vmem:[%s205 + $0x500] sm:$0xff]
        %v399 = vld [vmem:[%s205 + $0x508] sm:$0xff]
        %v400 = vld [vmem:[%s205 + $0x510] sm:$0xff]
        %v401 = vld [vmem:[%s205 + $0x518] sm:$0xff]
        %v402 = vld [vmem:[%s205 + $0x520] sm:$0xff]
        %v403 = vld [vmem:[%s205 + $0x528] sm:$0xff]
        %v404 = vld [vmem:[%s205 + $0x530] sm:$0xff]
        %v405 = vld [vmem:[%s205 + $0x538] sm:$0xff]
        %v406 = vld [vmem:[%s205 + $0x540] sm:$0xff]
        %v407 = vld [vmem:[%s205 + $0x548] sm:$0xff]
        %v408 = vld [vmem:[%s205 + $0x550] sm:$0xff]
        %v409 = vld [vmem:[%s205 + $0x558] sm:$0xff]
        %v410 = vld [vmem:[%s205 + $0x560] sm:$0xff]
        %v411 = vld [vmem:[%s205 + $0x568] sm:$0xff]
        %v412 = vld [vmem:[%s205 + $0x570] sm:$0xff]
        %v413 = vld [vmem:[%s205 + $0x578] sm:$0xff]
        %v414 = vld [vmem:[%s205 + $0x580] sm:$0xff]
        %v415 = vld [vmem:[%s205 + $0x588] sm:$0xff]
        %v416 = vld [vmem:[%s205 + $0x590] sm:$0xff]
        %v417 = vld [vmem:[%s205 + $0x598] sm:$0xff]
        %v418 = vld [vmem:[%s205 + $0x5a0] sm:$0xff]
        %v419 = vld [vmem:[%s205 + $0x5a8] sm:$0xff]
        %v420 = vld [vmem:[%s205 + $0x5b0] sm:$0xff]
        %v421 = vld [vmem:[%s205 + $0x5b8] sm:$0xff]
        %v422 = vld [vmem:[%s205 + $0x5c0] sm:$0xff]
        %v423 = vld [vmem:[%s205 + $0x5c8] sm:$0xff]
        %v424 = vld [vmem:[%s205 + $0x5d0] sm:$0xff]
        %v425 = vld [vmem:[%s205 + $0x5d8] sm:$0xff]
        %v426 = vld [vmem:[%s205 + $0x5e0] sm:$0xff]
        %v427 = vld [vmem:[%s205 + $0x5e8] sm:$0xff]
        %v428 = vld [vmem:[%s205 + $0x5f0] sm:$0xff]
        %v429 = vld [vmem:[%s205 + $0x5f8] sm:$0xff]
        %v430 = vld [vmem:[%s205 + $0x600] sm:$0xff]
        %v431 = vld [vmem:[%s205 + $0x608] sm:$0xff]
        %v432 = vld [vmem:[%s205 + $0x610] sm:$0xff]
        %v433 = vld [vmem:[%s205 + $0x618] sm:$0xff]
        %v434 = vld [vmem:[%s205 + $0x620] sm:$0xff]
        %v435 = vld [vmem:[%s205 + $0x628] sm:$0xff]
        %v436 = vld [vmem:[%s205 + $0x630] sm:$0xff]
        %v437 = vld [vmem:[%s205 + $0x638] sm:$0xff]
        %v438 = vld [vmem:[%s205 + $0x640] sm:$0xff]
        %v439 = vld [vmem:[%s205 + $0x648] sm:$0xff]
        %v440 = vld [vmem:[%s205 + $0x650] sm:$0xff]
        %v441 = vld [vmem:[%s205 + $0x658] sm:$0xff]
        %v442 = vld [vmem:[%s205 + $0x660] sm:$0xff]
        %v443 = vld [vmem:[%s205 + $0x668] sm:$0xff]
        %v444 = vld [vmem:[%s205 + $0x670] sm:$0xff]
        %v445 = vld [vmem:[%s205 + $0x678] sm:$0xff]
        %v446 = vld [vmem:[%s205 + $0x680] sm:$0xff]
        %v447 = vld [vmem:[%s205 + $0x688] sm:$0xff]
        %v448 = vld [vmem:[%s205 + $0x690] sm:$0xff]
        %v449 = vld [vmem:[%s205 + $0x698] sm:$0xff]
        %v450 = vld [vmem:[%s205 + $0x6a0] sm:$0xff]
        %v451 = vld [vmem:[%s205 + $0x6a8] sm:$0xff]
        %v452 = vld [vmem:[%s205 + $0x6b0] sm:$0xff]
        %v453 = vld [vmem:[%s205 + $0x6b8] sm:$0xff]
        %v454 = vld [vmem:[%s205 + $0x6c0] sm:$0xff]
        %v455 = vld [vmem:[%s205 + $0x6c8] sm:$0xff]
        %v456 = vld [vmem:[%s205 + $0x6d0] sm:$0xff]
        %v457 = vld [vmem:[%s205 + $0x6d8] sm:$0xff]
        %v458 = vld [vmem:[%s205 + $0x6e0] sm:$0xff]
        %v459 = vld [vmem:[%s205 + $0x6e8] sm:$0xff]
        %v460 = vld [vmem:[%s205 + $0x6f0] sm:$0xff]
        %v461 = vld [vmem:[%s205 + $0x6f8] sm:$0xff]
        %v462 = vld [vmem:[%s205 + $0x700] sm:$0xff]
        %v463 = vld [vmem:[%s205 + $0x708] sm:$0xff]
        %v464 = vld [vmem:[%s205 + $0x710] sm:$0xff]
        %v465 = vld [vmem:[%s205 + $0x718] sm:$0xff]
        %v466 = vld [vmem:[%s205 + $0x720] sm:$0xff]
        %v467 = vld [vmem:[%s205 + $0x728] sm:$0xff]
        %v468 = vld [vmem:[%s205 + $0x730] sm:$0xff]
        %v469 = vld [vmem:[%s205 + $0x738] sm:$0xff]
        %v470 = vld [vmem:[%s205 + $0x740] sm:$0xff]
        %v471 = vld [vmem:[%s205 + $0x748] sm:$0xff]
        %v472 = vld [vmem:[%s205 + $0x750] sm:$0xff]
        %v473 = vld [vmem:[%s205 + $0x758] sm:$0xff]
        %v474 = vld [vmem:[%s205 + $0x760] sm:$0xff]
        %v475 = vld [vmem:[%s205 + $0x768] sm:$0xff]
        %v476 = vld [vmem:[%s205 + $0x770] sm:$0xff]
        %v477 = vld [vmem:[%s205 + $0x778] sm:$0xff]
        %v478 = vld [vmem:[%s205 + $0x780] sm:$0xff]
        %v479 = vld [vmem:[%s205 + $0x788] sm:$0xff]
        %v480 = vld [vmem:[%s205 + $0x790] sm:$0xff]
        %v481 = vld [vmem:[%s205 + $0x798] sm:$0xff]
        %v482 = vld [vmem:[%s205 + $0x7a0] sm:$0xff]
        %v483 = vld [vmem:[%s205 + $0x7a8] sm:$0xff]
        %v484 = vld [vmem:[%s205 + $0x7b0] sm:$0xff]
        %v485 = vld [vmem:[%s205 + $0x7b8] sm:$0xff]
        %v486 = vld [vmem:[%s205 + $0x7c0] sm:$0xff]
        %v487 = vld [vmem:[%s205 + $0x7c8] sm:$0xff]
        %v488 = vld [vmem:[%s205 + $0x7d0] sm:$0xff]
        %v489 = vld [vmem:[%s205 + $0x7d8] sm:$0xff]
        %v490 = vld [vmem:[%s205 + $0x7e0] sm:$0xff]
        %v491 = vld [vmem:[%s205 + $0x7e8] sm:$0xff]
        %v492 = vld [vmem:[%s205 + $0x7f0] sm:$0xff]
        %v493 = vld [vmem:[%s205 + $0x7f8] sm:$0xff]
        %v494 = vld [vmem:[%s205 + $0x800] sm:$0xff]
        %v495 = vld [vmem:[%s205 + $0x808] sm:$0xff]
        %v496 = vld [vmem:[%s205 + $0x810] sm:$0xff]
        %v497 = vld [vmem:[%s205 + $0x818] sm:$0xff]
        %v498 = vld [vmem:[%s205 + $0x820] sm:$0xff]
        %v499 = vld [vmem:[%s205 + $0x828] sm:$0xff]
        %v500 = vld [vmem:[%s205 + $0x830] sm:$0xff]
        %v501 = vld [vmem:[%s205 + $0x838] sm:$0xff]
        %v502 = vld [vmem:[%s205 + $0x840] sm:$0xff]
        %v503 = vld [vmem:[%s205 + $0x848] sm:$0xff]
        %v504 = vld [vmem:[%s205 + $0x850] sm:$0xff]
        %v505 = vld [vmem:[%s205 + $0x858] sm:$0xff]
        %v506 = vld [vmem:[%s205 + $0x860] sm:$0xff]
        %v507 = vld [vmem:[%s205 + $0x868] sm:$0xff]
        %v508 = vld [vmem:[%s205 + $0x870] sm:$0xff]
        %v509 = vld [vmem:[%s205 + $0x878] sm:$0xff]
        %v510 = vld [vmem:[%s205 + $0x880] sm:$0xff]
        %v511 = vld [vmem:[%s205 + $0x888] sm:$0xff]
        %v512 = vld [vmem:[%s205 + $0x890] sm:$0xff]
        %v513 = vld [vmem:[%s205 + $0x898] sm:$0xff]
        %v514 = vld [vmem:[%s205 + $0x8a0] sm:$0xff]
        %v515 = vld [vmem:[%s205 + $0x8a8] sm:$0xff]
        %v516 = vld [vmem:[%s205 + $0x8b0] sm:$0xff]
        %v517 = vld [vmem:[%s205 + $0x8b8] sm:$0xff]
        %v518 = vld [vmem:[%s205 + $0x8c0] sm:$0xff]
        %v519 = vld [vmem:[%s205 + $0x8c8] sm:$0xff]
        %v520 = vld [vmem:[%s205 + $0x8d0] sm:$0xff]
        %v521 = vld [vmem:[%s205 + $0x8d8] sm:$0xff]
        %v522 = vld [vmem:[%s205 + $0x8e0] sm:$0xff]
        %v523 = vld [vmem:[%s205 + $0x8e8] sm:$0xff]
        %v524 = vld [vmem:[%s205 + $0x8f0] sm:$0xff]
        %v525 = vld [vmem:[%s205 + $0x8f8] sm:$0xff]
        %v526 = vld [vmem:[%s205 + $0x900] sm:$0xff]
        %v527 = vld [vmem:[%s205 + $0x908] sm:$0xff]
        %v528 = vld [vmem:[%s205 + $0x910] sm:$0xff]
        %v529 = vld [vmem:[%s205 + $0x918] sm:$0xff]
        %v530 = vld [vmem:[%s205 + $0x920] sm:$0xff]
        %v531 = vld [vmem:[%s205 + $0x928] sm:$0xff]
        %v532 = vld [vmem:[%s205 + $0x930] sm:$0xff]
        %v533 = vld [vmem:[%s205 + $0x938] sm:$0xff]
        %v534 = vld [vmem:[%s205 + $0x940] sm:$0xff]
        %v535 = vld [vmem:[%s205 + $0x948] sm:$0xff]
        %v536 = vld [vmem:[%s205 + $0x950] sm:$0xff]
        %v537 = vld [vmem:[%s205 + $0x958] sm:$0xff]
        %v538 = vld [vmem:[%s205 + $0x960] sm:$0xff]
        %v539 = vld [vmem:[%s205 + $0x968] sm:$0xff]
        %v540 = vld [vmem:[%s205 + $0x970] sm:$0xff]
        %v541 = vld [vmem:[%s205 + $0x978] sm:$0xff]
        %v542 = vld [vmem:[%s205 + $0x980] sm:$0xff]
        %v543 = vld [vmem:[%s205 + $0x988] sm:$0xff]
        %v544 = vld [vmem:[%s205 + $0x990] sm:$0xff]
        %v545 = vld [vmem:[%s205 + $0x998] sm:$0xff]
        %v546 = vld [vmem:[%s205 + $0x9a0] sm:$0xff]
        %v547 = vld [vmem:[%s205 + $0x9a8] sm:$0xff]
        %v548 = vld [vmem:[%s205 + $0x9b0] sm:$0xff]
        %v549 = vld [vmem:[%s205 + $0x9b8] sm:$0xff]
        %v550 = vld [vmem:[%s205 + $0x9c0] sm:$0xff]
        %v551 = vld [vmem:[%s205 + $0x9c8] sm:$0xff]
        %v552 = vld [vmem:[%s205 + $0x9d0] sm:$0xff]
        %v553 = vld [vmem:[%s205 + $0x9d8] sm:$0xff]
        %v554 = vld [vmem:[%s205 + $0x9e0] sm:$0xff]
        %v555 = vld [vmem:[%s205 + $0x9e8] sm:$0xff]
        %v556 = vld [vmem:[%s205 + $0x9f0] sm:$0xff]
        %v557 = vld [vmem:[%s205 + $0x9f8] sm:$0xff]
        %v558 = vld [vmem:[%s205 + $0xa00] sm:$0xff]
        %v559 = vld [vmem:[%s205 + $0xa08] sm:$0xff]
        %v560 = vld [vmem:[%s205 + $0xa10] sm:$0xff]
        %v561 = vld [vmem:[%s205 + $0xa18] sm:$0xff]
        %v562 = vld [vmem:[%s205 + $0xa20] sm:$0xff]
        %v563 = vld [vmem:[%s205 + $0xa28] sm:$0xff]
        %v564 = vld [vmem:[%s205 + $0xa30] sm:$0xff]
        %v565 = vld [vmem:[%s205 + $0xa38] sm:$0xff]
        %v566 = vld [vmem:[%s205 + $0xa40] sm:$0xff]
        %v567 = vld [vmem:[%s205 + $0xa48] sm:$0xff]
        %v568 = vld [vmem:[%s205 + $0xa50] sm:$0xff]
        %v569 = vld [vmem:[%s205 + $0xa58] sm:$0xff]
        %v570 = vld [vmem:[%s205 + $0xa60] sm:$0xff]
        %v571 = vld [vmem:[%s205 + $0xa68] sm:$0xff]
        %v572 = vld [vmem:[%s205 + $0xa70] sm:$0xff]
        %v573 = vld [vmem:[%s205 + $0xa78] sm:$0xff]
        %v574 = vld [vmem:[%s205 + $0xa80] sm:$0xff]
        %v575 = vld [vmem:[%s205 + $0xa88] sm:$0xff]
        %v576 = vld [vmem:[%s205 + $0xa90] sm:$0xff]
        %v577 = vld [vmem:[%s205 + $0xa98] sm:$0xff]
        %v578 = vld [vmem:[%s205 + $0xaa0] sm:$0xff]
        %v579 = vld [vmem:[%s205 + $0xaa8] sm:$0xff]
        %v580 = vld [vmem:[%s205 + $0xab0] sm:$0xff]
        %v581 = vld [vmem:[%s205 + $0xab8] sm:$0xff]
        %v582 = vld [vmem:[%s205 + $0xac0] sm:$0xff]
        %v583 = vld [vmem:[%s205 + $0xac8] sm:$0xff]
        %v584 = vld [vmem:[%s205 + $0xad0] sm:$0xff]
        %v585 = vld [vmem:[%s205 + $0xad8] sm:$0xff]
        %v586 = vld [vmem:[%s205 + $0xae0] sm:$0xff]
        %v587 = vld [vmem:[%s205 + $0xae8] sm:$0xff]
        %v588 = vld [vmem:[%s205 + $0xaf0] sm:$0xff]
        %v589 = vld [vmem:[%s205 + $0xaf8] sm:$0xff]
        %v590 = vld [vmem:[%s205 + $0xb00] sm:$0xff]
        %v591 = vld [vmem:[%s205 + $0xb08] sm:$0xff]
        %v592 = vld [vmem:[%s205 + $0xb10] sm:$0xff]
        %v593 = vld [vmem:[%s205 + $0xb18] sm:$0xff]
        %v594 = vld [vmem:[%s205 + $0xb20] sm:$0xff]
        %v595 = vld [vmem:[%s205 + $0xb28] sm:$0xff]
        %v596 = vld [vmem:[%s205 + $0xb30] sm:$0xff]
        %v597 = vld [vmem:[%s205 + $0xb38] sm:$0xff]
        %v598 = vld [vmem:[%s205 + $0xb40] sm:$0xff]
        %v599 = vld [vmem:[%s205 + $0xb48] sm:$0xff]
        %v600 = vld [vmem:[%s205 + $0xb50] sm:$0xff]
        %v601 = vld [vmem:[%s205 + $0xb58] sm:$0xff]
        %v602 = vld [vmem:[%s205 + $0xb60] sm:$0xff]
        %v603 = vld [vmem:[%s205 + $0xb68] sm:$0xff]
        %v604 = vld [vmem:[%s205 + $0xb70] sm:$0xff]
        %v605 = vld [vmem:[%s205 + $0xb78] sm:$0xff]
        %v606 = vld [vmem:[%s205 + $0xb80] sm:$0xff]
        %v607 = vld [vmem:[%s205 + $0xb88] sm:$0xff]
        %v608 = vld [vmem:[%s205 + $0xb90] sm:$0xff]
        %v609 = vld [vmem:[%s205 + $0xb98] sm:$0xff]
        %v610 = vld [vmem:[%s205 + $0xba0] sm:$0xff]
        %v611 = vld [vmem:[%s205 + $0xba8] sm:$0xff]
        %v612 = vld [vmem:[%s205 + $0xbb0] sm:$0xff]
        %v613 = vld [vmem:[%s205 + $0xbb8] sm:$0xff]
        %v614 = vld [vmem:[%s205 + $0xbc0] sm:$0xff]
        %v615 = vld [vmem:[%s205 + $0xbc8] sm:$0xff]
        %v616 = vld [vmem:[%s205 + $0xbd0] sm:$0xff]
        %v617 = vld [vmem:[%s205 + $0xbd8] sm:$0xff]
        %v618 = vld [vmem:[%s205 + $0xbe0] sm:$0xff]
        %v619 = vld [vmem:[%s205 + $0xbe8] sm:$0xff]
        %v620 = vld [vmem:[%s205 + $0xbf0] sm:$0xff]
        %v621 = vld [vmem:[%s205 + $0xbf8] sm:$0xff]
        %v622 = vld [vmem:[%s205 + $0xc00] sm:$0xff]
        %v623 = vld [vmem:[%s205 + $0xc08] sm:$0xff]
        %v624 = vld [vmem:[%s205 + $0xc10] sm:$0xff]
        %v625 = vld [vmem:[%s205 + $0xc18] sm:$0xff]
        %v626 = vld [vmem:[%s205 + $0xc20] sm:$0xff]
        %v627 = vld [vmem:[%s205 + $0xc28] sm:$0xff]
        %v628 = vld [vmem:[%s205 + $0xc30] sm:$0xff]
        %v629 = vld [vmem:[%s205 + $0xc38] sm:$0xff]
        %v630 = vld [vmem:[%s205 + $0xc40] sm:$0xff]
        %v631 = vld [vmem:[%s205 + $0xc48] sm:$0xff]
        %v632 = vld [vmem:[%s205 + $0xc50] sm:$0xff]
        %v633 = vld [vmem:[%s205 + $0xc58] sm:$0xff]
        %v634 = vld [vmem:[%s205 + $0xc60] sm:$0xff]
        %v635 = vld [vmem:[%s205 + $0xc68] sm:$0xff]
        %v636 = vld [vmem:[%s205 + $0xc70] sm:$0xff]
        %v637 = vld [vmem:[%s205 + $0xc78] sm:$0xff]
        %v638 = vld [vmem:[%s205 + $0xc80] sm:$0xff]
        %v639 = vld [vmem:[%s205 + $0xc88] sm:$0xff]
        %v640 = vld [vmem:[%s205 + $0xc90] sm:$0xff]
        %v641 = vld [vmem:[%s205 + $0xc98] sm:$0xff]
        %v642 = vld [vmem:[%s205 + $0xca0] sm:$0xff]
        %v643 = vld [vmem:[%s205 + $0xca8] sm:$0xff]
        %v644 = vld [vmem:[%s205 + $0xcb0] sm:$0xff]
        %v645 = vld [vmem:[%s205 + $0xcb8] sm:$0xff]
        %v646 = vld [vmem:[%s205 + $0xcc0] sm:$0xff]
        %v647 = vld [vmem:[%s205 + $0xcc8] sm:$0xff]
        %v648 = vld [vmem:[%s205 + $0xcd0] sm:$0xff]
        %v649 = vld [vmem:[%s205 + $0xcd8] sm:$0xff]
        %v650 = vld [vmem:[%s205 + $0xce0] sm:$0xff]
        %v651 = vld [vmem:[%s205 + $0xce8] sm:$0xff]
        %v652 = vld [vmem:[%s205 + $0xcf0] sm:$0xff]
        %v653 = vld [vmem:[%s205 + $0xcf8] sm:$0xff]
        %v654 = vld [vmem:[%s205 + $0xd00] sm:$0xff]
        %v655 = vld [vmem:[%s205 + $0xd08] sm:$0xff]
        %v656 = vld [vmem:[%s205 + $0xd10] sm:$0xff]
        %v657 = vld [vmem:[%s205 + $0xd18] sm:$0xff]
        %v658 = vld [vmem:[%s205 + $0xd20] sm:$0xff]
        %v659 = vld [vmem:[%s205 + $0xd28] sm:$0xff]
        %v660 = vld [vmem:[%s205 + $0xd30] sm:$0xff]
        %v661 = vld [vmem:[%s205 + $0xd38] sm:$0xff]
        %v662 = vld [vmem:[%s205 + $0xd40] sm:$0xff]
        %v663 = vld [vmem:[%s205 + $0xd48] sm:$0xff]
        %v664 = vld [vmem:[%s205 + $0xd50] sm:$0xff]
        %v665 = vld [vmem:[%s205 + $0xd58] sm:$0xff]
        %v666 = vld [vmem:[%s205 + $0xd60] sm:$0xff]
        %v667 = vld [vmem:[%s205 + $0xd68] sm:$0xff]
        %v668 = vld [vmem:[%s205 + $0xd70] sm:$0xff]
        %v669 = vld [vmem:[%s205 + $0xd78] sm:$0xff]
        %v670 = vld [vmem:[%s205 + $0xd80] sm:$0xff]
        %v671 = vld [vmem:[%s205 + $0xd88] sm:$0xff]
        %v672 = vld [vmem:[%s205 + $0xd90] sm:$0xff]
        %v673 = vld [vmem:[%s205 + $0xd98] sm:$0xff]
        %v674 = vld [vmem:[%s205 + $0xda0] sm:$0xff]
        %v675 = vld [vmem:[%s205 + $0xda8] sm:$0xff]
        %v676 = vld [vmem:[%s205 + $0xdb0] sm:$0xff]
        %v677 = vld [vmem:[%s205 + $0xdb8] sm:$0xff]
        %v678 = vld [vmem:[%s205 + $0xdc0] sm:$0xff]
        %v679 = vld [vmem:[%s205 + $0xdc8] sm:$0xff]
        %v680 = vld [vmem:[%s205 + $0xdd0] sm:$0xff]
        %v681 = vld [vmem:[%s205 + $0xdd8] sm:$0xff]
        %v682 = vld [vmem:[%s205 + $0xde0] sm:$0xff]
        %v683 = vld [vmem:[%s205 + $0xde8] sm:$0xff]
        %v684 = vld [vmem:[%s205 + $0xdf0] sm:$0xff]
        %v685 = vld [vmem:[%s205 + $0xdf8] sm:$0xff]
        %v686 = vld [vmem:[%s205 + $0xe00] sm:$0xff]
        %v687 = vld [vmem:[%s205 + $0xe08] sm:$0xff]
        %v688 = vld [vmem:[%s205 + $0xe10] sm:$0xff]
        %v689 = vld [vmem:[%s205 + $0xe18] sm:$0xff]
        %v690 = vld [vmem:[%s205 + $0xe20] sm:$0xff]
        %v691 = vld [vmem:[%s205 + $0xe28] sm:$0xff]
        %v692 = vld [vmem:[%s205 + $0xe30] sm:$0xff]
        %v693 = vld [vmem:[%s205 + $0xe38] sm:$0xff]
        %v694 = vld [vmem:[%s205 + $0xe40] sm:$0xff]
        %v695 = vld [vmem:[%s205 + $0xe48] sm:$0xff]
        %v696 = vld [vmem:[%s205 + $0xe50] sm:$0xff]
        %v697 = vld [vmem:[%s205 + $0xe58] sm:$0xff]
        %v698 = vld [vmem:[%s205 + $0xe60] sm:$0xff]
        %v699 = vld [vmem:[%s205 + $0xe68] sm:$0xff]
        %v700 = vld [vmem:[%s205 + $0xe70] sm:$0xff]
        %v701 = vld [vmem:[%s205 + $0xe78] sm:$0xff]
        %v702 = vld [vmem:[%s205 + $0xe80] sm:$0xff]
        %v703 = vld [vmem:[%s205 + $0xe88] sm:$0xff]
        %v704 = vld [vmem:[%s205 + $0xe90] sm:$0xff]
        %v705 = vld [vmem:[%s205 + $0xe98] sm:$0xff]
        %v706 = vld [vmem:[%s205 + $0xea0] sm:$0xff]
        %v707 = vld [vmem:[%s205 + $0xea8] sm:$0xff]
        %v708 = vld [vmem:[%s205 + $0xeb0] sm:$0xff]
        %v709 = vld [vmem:[%s205 + $0xeb8] sm:$0xff]
        %v710 = vld [vmem:[%s205 + $0xec0] sm:$0xff]
        %v711 = vld [vmem:[%s205 + $0xec8] sm:$0xff]
        %v712 = vld [vmem:[%s205 + $0xed0] sm:$0xff]
        %v713 = vld [vmem:[%s205 + $0xed8] sm:$0xff]
        %v714 = vld [vmem:[%s205 + $0xee0] sm:$0xff]
        %v715 = vld [vmem:[%s205 + $0xee8] sm:$0xff]
        %v716 = vld [vmem:[%s205 + $0xef0] sm:$0xff]
        %v717 = vld [vmem:[%s205 + $0xef8] sm:$0xff]
        %v718 = vld [vmem:[%s205 + $0xf00] sm:$0xff]
        %v719 = vld [vmem:[%s205 + $0xf08] sm:$0xff]
        %v720 = vld [vmem:[%s205 + $0xf10] sm:$0xff]
        %v721 = vld [vmem:[%s205 + $0xf18] sm:$0xff]
        %v722 = vld [vmem:[%s205 + $0xf20] sm:$0xff]
        %v723 = vld [vmem:[%s205 + $0xf28] sm:$0xff]
        %v724 = vld [vmem:[%s205 + $0xf30] sm:$0xff]
        %v725 = vld [vmem:[%s205 + $0xf38] sm:$0xff]
        %v726 = vld [vmem:[%s205 + $0xf40] sm:$0xff]
        %v727 = vld [vmem:[%s205 + $0xf48] sm:$0xff]
        %v728 = vld [vmem:[%s205 + $0xf50] sm:$0xff]
        %v729 = vld [vmem:[%s205 + $0xf58] sm:$0xff]
        %v730 = vld [vmem:[%s205 + $0xf60] sm:$0xff]
        %v731 = vld [vmem:[%s205 + $0xf68] sm:$0xff]
        %v732 = vld [vmem:[%s205 + $0xf70] sm:$0xff]
        %v733 = vld [vmem:[%s205 + $0xf78] sm:$0xff]
        %v734 = vld [vmem:[%s205 + $0xf80] sm:$0xff]
        %v735 = vld [vmem:[%s205 + $0xf88] sm:$0xff]
        %v736 = vld [vmem:[%s205 + $0xf90] sm:$0xff]
        %v737 = vld [vmem:[%s205 + $0xf98] sm:$0xff]
        %v738 = vld [vmem:[%s205 + $0xfa0] sm:$0xff]
        %v739 = vld [vmem:[%s205 + $0xfa8] sm:$0xff]
        %v740 = vld [vmem:[%s205 + $0xfb0] sm:$0xff]
        %v741 = vld [vmem:[%s205 + $0xfb8] sm:$0xff]
        %v742 = vld [vmem:[%s205 + $0xfc0] sm:$0xff]
        %v743 = vld [vmem:[%s205 + $0xfc8] sm:$0xff]
        %v744 = vld [vmem:[%s205 + $0xfd0] sm:$0xff]
        %v745 = vld [vmem:[%s205 + $0xfd8] sm:$0xff]
        %v746 = vld [vmem:[%s205 + $0xfe0] sm:$0xff]
        %v747 = vld [vmem:[%s205 + $0xfe8] sm:$0xff]
        %v748 = vld [vmem:[%s205 + $0xff0] sm:$0xff]
        %v749 = vld [vmem:[%s205 + $0xff8] sm:$0xff]
        %v750 = vpack.c.bf16 %v240, %v238
        %v751 = vpack.c.bf16 %v241, %v239
        %v752 = vpack.c.bf16 %v244, %v242
        %v753 = vpack.c.bf16 %v245, %v243
        %v754 = vpack.c.bf16 %v248, %v246
        %v755 = vpack.c.bf16 %v249, %v247
        %v756 = vpack.c.bf16 %v252, %v250
        %v757 = vpack.c.bf16 %v253, %v251
        %v758 = vpack.c.bf16 %v256, %v254
        %v759 = vpack.c.bf16 %v257, %v255
        %v760 = vpack.c.bf16 %v260, %v258
        %v761 = vpack.c.bf16 %v261, %v259
        %v762 = vpack.c.bf16 %v264, %v262
        %v763 = vpack.c.bf16 %v265, %v263
        %v764 = vpack.c.bf16 %v268, %v266
        %v765 = vpack.c.bf16 %v269, %v267
        %v766 = vpack.c.bf16 %v272, %v270
        %v767 = vpack.c.bf16 %v273, %v271
        %v768 = vpack.c.bf16 %v276, %v274
        %v769 = vpack.c.bf16 %v277, %v275
        %v770 = vpack.c.bf16 %v280, %v278
        %v771 = vpack.c.bf16 %v281, %v279
        %v772 = vpack.c.bf16 %v284, %v282
        %v773 = vpack.c.bf16 %v285, %v283
        %v774 = vpack.c.bf16 %v288, %v286
        %v775 = vpack.c.bf16 %v289, %v287
        %v776 = vpack.c.bf16 %v292, %v290
        %v777 = vpack.c.bf16 %v293, %v291
        %v778 = vpack.c.bf16 %v296, %v294
        %v779 = vpack.c.bf16 %v297, %v295
        %v780 = vpack.c.bf16 %v300, %v298
        %v781 = vpack.c.bf16 %v301, %v299
        %v782 = vpack.c.bf16 %v304, %v302
        %v783 = vpack.c.bf16 %v305, %v303
        %v784 = vpack.c.bf16 %v308, %v306
        %v785 = vpack.c.bf16 %v309, %v307
        %v786 = vpack.c.bf16 %v312, %v310
        %v787 = vpack.c.bf16 %v313, %v311
        %v788 = vpack.c.bf16 %v316, %v314
        %v789 = vpack.c.bf16 %v317, %v315
        %v790 = vpack.c.bf16 %v320, %v318
        %v791 = vpack.c.bf16 %v321, %v319
        %v792 = vpack.c.bf16 %v324, %v322
        %v793 = vpack.c.bf16 %v325, %v323
        %v794 = vpack.c.bf16 %v328, %v326
        %v795 = vpack.c.bf16 %v329, %v327
        %v796 = vpack.c.bf16 %v332, %v330
        %v797 = vpack.c.bf16 %v333, %v331
        %v798 = vpack.c.bf16 %v336, %v334
        %v799 = vpack.c.bf16 %v337, %v335
        %v800 = vpack.c.bf16 %v340, %v338
        %v801 = vpack.c.bf16 %v341, %v339
        %v802 = vpack.c.bf16 %v344, %v342
        %v803 = vpack.c.bf16 %v345, %v343
        %v804 = vpack.c.bf16 %v348, %v346
        %v805 = vpack.c.bf16 %v349, %v347
        %v806 = vpack.c.bf16 %v352, %v350
        %v807 = vpack.c.bf16 %v353, %v351
        %v808 = vpack.c.bf16 %v356, %v354
        %v809 = vpack.c.bf16 %v357, %v355
        %v810 = vpack.c.bf16 %v360, %v358
        %v811 = vpack.c.bf16 %v361, %v359
        %v812 = vpack.c.bf16 %v364, %v362
        %v813 = vpack.c.bf16 %v365, %v363
        %v814 = vpack.c.bf16 %v368, %v366
        %v815 = vpack.c.bf16 %v369, %v367
        %v816 = vpack.c.bf16 %v372, %v370
        %v817 = vpack.c.bf16 %v373, %v371
        %v818 = vpack.c.bf16 %v376, %v374
        %v819 = vpack.c.bf16 %v377, %v375
        %v820 = vpack.c.bf16 %v380, %v378
        %v821 = vpack.c.bf16 %v381, %v379
        %v822 = vpack.c.bf16 %v384, %v382
        %v823 = vpack.c.bf16 %v385, %v383
        %v824 = vpack.c.bf16 %v388, %v386
        %v825 = vpack.c.bf16 %v389, %v387
        %v826 = vpack.c.bf16 %v392, %v390
        %v827 = vpack.c.bf16 %v393, %v391
        %v828 = vpack.c.bf16 %v396, %v394
        %v829 = vpack.c.bf16 %v397, %v395
        %v830 = vpack.c.bf16 %v400, %v398
        %v831 = vpack.c.bf16 %v401, %v399
        %v832 = vpack.c.bf16 %v404, %v402
        %v833 = vpack.c.bf16 %v405, %v403
        %v834 = vpack.c.bf16 %v408, %v406
        %v835 = vpack.c.bf16 %v409, %v407
        %v836 = vpack.c.bf16 %v412, %v410
        %v837 = vpack.c.bf16 %v413, %v411
        %v838 = vpack.c.bf16 %v416, %v414
        %v839 = vpack.c.bf16 %v417, %v415
        %v840 = vpack.c.bf16 %v420, %v418
        %v841 = vpack.c.bf16 %v421, %v419
        %v842 = vpack.c.bf16 %v424, %v422
        %v843 = vpack.c.bf16 %v425, %v423
        %v844 = vpack.c.bf16 %v428, %v426
        %v845 = vpack.c.bf16 %v429, %v427
        %v846 = vpack.c.bf16 %v432, %v430
        %v847 = vpack.c.bf16 %v433, %v431
        %v848 = vpack.c.bf16 %v436, %v434
        %v849 = vpack.c.bf16 %v437, %v435
        %v850 = vpack.c.bf16 %v440, %v438
        %v851 = vpack.c.bf16 %v441, %v439
        %v852 = vpack.c.bf16 %v444, %v442
        %v853 = vpack.c.bf16 %v445, %v443
        %v854 = vpack.c.bf16 %v448, %v446
        %v855 = vpack.c.bf16 %v449, %v447
        %v856 = vpack.c.bf16 %v452, %v450
        %v857 = vpack.c.bf16 %v453, %v451
        %v858 = vpack.c.bf16 %v456, %v454
        %v859 = vpack.c.bf16 %v457, %v455
        %v860 = vpack.c.bf16 %v460, %v458
        %v861 = vpack.c.bf16 %v461, %v459
        %v862 = vpack.c.bf16 %v464, %v462
        %v863 = vpack.c.bf16 %v465, %v463
        %v864 = vpack.c.bf16 %v468, %v466
        %v865 = vpack.c.bf16 %v469, %v467
        %v866 = vpack.c.bf16 %v472, %v470
        %v867 = vpack.c.bf16 %v473, %v471
        %v868 = vpack.c.bf16 %v476, %v474
        %v869 = vpack.c.bf16 %v477, %v475
        %v870 = vpack.c.bf16 %v480, %v478
        %v871 = vpack.c.bf16 %v481, %v479
        %v872 = vpack.c.bf16 %v484, %v482
        %v873 = vpack.c.bf16 %v485, %v483
        %v874 = vpack.c.bf16 %v488, %v486
        %v875 = vpack.c.bf16 %v489, %v487
        %v876 = vpack.c.bf16 %v492, %v490
        %v877 = vpack.c.bf16 %v493, %v491
        %v878 = vpack.c.bf16 %v496, %v494
        %v879 = vpack.c.bf16 %v497, %v495
        %v880 = vpack.c.bf16 %v500, %v498
        %v881 = vpack.c.bf16 %v501, %v499
        %v882 = vpack.c.bf16 %v504, %v502
        %v883 = vpack.c.bf16 %v505, %v503
        %v884 = vpack.c.bf16 %v508, %v506
        %v885 = vpack.c.bf16 %v509, %v507
        %v886 = vpack.c.bf16 %v512, %v510
        %v887 = vpack.c.bf16 %v513, %v511
        %v888 = vpack.c.bf16 %v516, %v514
        %v889 = vpack.c.bf16 %v517, %v515
        %v890 = vpack.c.bf16 %v520, %v518
        %v891 = vpack.c.bf16 %v521, %v519
        %v892 = vpack.c.bf16 %v524, %v522
        %v893 = vpack.c.bf16 %v525, %v523
        %v894 = vpack.c.bf16 %v528, %v526
        %v895 = vpack.c.bf16 %v529, %v527
        %v896 = vpack.c.bf16 %v532, %v530
        %v897 = vpack.c.bf16 %v533, %v531
        %v898 = vpack.c.bf16 %v536, %v534
        %v899 = vpack.c.bf16 %v537, %v535
        %v900 = vpack.c.bf16 %v540, %v538
        %v901 = vpack.c.bf16 %v541, %v539
        %v902 = vpack.c.bf16 %v544, %v542
        %v903 = vpack.c.bf16 %v545, %v543
        %v904 = vpack.c.bf16 %v548, %v546
        %v905 = vpack.c.bf16 %v549, %v547
        %v906 = vpack.c.bf16 %v552, %v550
        %v907 = vpack.c.bf16 %v553, %v551
        %v908 = vpack.c.bf16 %v556, %v554
        %v909 = vpack.c.bf16 %v557, %v555
        %v910 = vpack.c.bf16 %v560, %v558
        %v911 = vpack.c.bf16 %v561, %v559
        %v912 = vpack.c.bf16 %v564, %v562
        %v913 = vpack.c.bf16 %v565, %v563
        %v914 = vpack.c.bf16 %v568, %v566
        %v915 = vpack.c.bf16 %v569, %v567
        %v916 = vpack.c.bf16 %v572, %v570
        %v917 = vpack.c.bf16 %v573, %v571
        %v918 = vpack.c.bf16 %v576, %v574
        %v919 = vpack.c.bf16 %v577, %v575
        %v920 = vpack.c.bf16 %v580, %v578
        %v921 = vpack.c.bf16 %v581, %v579
        %v922 = vpack.c.bf16 %v584, %v582
        %v923 = vpack.c.bf16 %v585, %v583
        %v924 = vpack.c.bf16 %v588, %v586
        %v925 = vpack.c.bf16 %v589, %v587
        %v926 = vpack.c.bf16 %v592, %v590
        %v927 = vpack.c.bf16 %v593, %v591
        %v928 = vpack.c.bf16 %v596, %v594
        %v929 = vpack.c.bf16 %v597, %v595
        %v930 = vpack.c.bf16 %v600, %v598
        %v931 = vpack.c.bf16 %v601, %v599
        %v932 = vpack.c.bf16 %v604, %v602
        %v933 = vpack.c.bf16 %v605, %v603
        %v934 = vpack.c.bf16 %v608, %v606
        %v935 = vpack.c.bf16 %v609, %v607
        %v936 = vpack.c.bf16 %v612, %v610
        %v937 = vpack.c.bf16 %v613, %v611
        %v938 = vpack.c.bf16 %v616, %v614
        %v939 = vpack.c.bf16 %v617, %v615
        %v940 = vpack.c.bf16 %v620, %v618
        %v941 = vpack.c.bf16 %v621, %v619
        %v942 = vpack.c.bf16 %v624, %v622
        %v943 = vpack.c.bf16 %v625, %v623
        %v944 = vpack.c.bf16 %v628, %v626
        %v945 = vpack.c.bf16 %v629, %v627
        %v946 = vpack.c.bf16 %v632, %v630
        %v947 = vpack.c.bf16 %v633, %v631
        %v948 = vpack.c.bf16 %v636, %v634
        %v949 = vpack.c.bf16 %v637, %v635
        %v950 = vpack.c.bf16 %v640, %v638
        %v951 = vpack.c.bf16 %v641, %v639
        %v952 = vpack.c.bf16 %v644, %v642
        %v953 = vpack.c.bf16 %v645, %v643
        %v954 = vpack.c.bf16 %v648, %v646
        %v955 = vpack.c.bf16 %v649, %v647
        %v956 = vpack.c.bf16 %v652, %v650
        %v957 = vpack.c.bf16 %v653, %v651
        %v958 = vpack.c.bf16 %v656, %v654
        %v959 = vpack.c.bf16 %v657, %v655
        %v960 = vpack.c.bf16 %v660, %v658
        %v961 = vpack.c.bf16 %v661, %v659
        %v962 = vpack.c.bf16 %v664, %v662
        %v963 = vpack.c.bf16 %v665, %v663
        %v964 = vpack.c.bf16 %v668, %v666
        %v965 = vpack.c.bf16 %v669, %v667
        %v966 = vpack.c.bf16 %v672, %v670
        %v967 = vpack.c.bf16 %v673, %v671
        %v968 = vpack.c.bf16 %v676, %v674
        %v969 = vpack.c.bf16 %v677, %v675
        %v970 = vpack.c.bf16 %v680, %v678
        %v971 = vpack.c.bf16 %v681, %v679
        %v972 = vpack.c.bf16 %v684, %v682
        %v973 = vpack.c.bf16 %v685, %v683
        %v974 = vpack.c.bf16 %v688, %v686
        %v975 = vpack.c.bf16 %v689, %v687
        %v976 = vpack.c.bf16 %v692, %v690
        %v977 = vpack.c.bf16 %v693, %v691
        %v978 = vpack.c.bf16 %v696, %v694
        %v979 = vpack.c.bf16 %v697, %v695
        %v980 = vpack.c.bf16 %v700, %v698
        %v981 = vpack.c.bf16 %v701, %v699
        %v982 = vpack.c.bf16 %v704, %v702
        %v983 = vpack.c.bf16 %v705, %v703
        %v984 = vpack.c.bf16 %v708, %v706
        %v985 = vpack.c.bf16 %v709, %v707
        %v986 = vpack.c.bf16 %v712, %v710
        %v987 = vpack.c.bf16 %v713, %v711
        %v988 = vpack.c.bf16 %v716, %v714
        %v989 = vpack.c.bf16 %v717, %v715
        %v990 = vpack.c.bf16 %v720, %v718
        %v991 = vpack.c.bf16 %v721, %v719
        %v992 = vpack.c.bf16 %v724, %v722
        %v993 = vpack.c.bf16 %v725, %v723
        %v994 = vpack.c.bf16 %v728, %v726
        %v995 = vpack.c.bf16 %v729, %v727
        %v996 = vpack.c.bf16 %v732, %v730
        %v997 = vpack.c.bf16 %v733, %v731
        %v998 = vpack.c.bf16 %v736, %v734
        %v999 = vpack.c.bf16 %v737, %v735
        %v1000 = vpack.c.bf16 %v740, %v738
        %v1001 = vpack.c.bf16 %v741, %v739
        %v1002 = vpack.c.bf16 %v744, %v742
        %v1003 = vpack.c.bf16 %v745, %v743
        %v1004 = vpack.c.bf16 %v748, %v746
        %v1005 = vpack.c.bf16 %v749, %v747
        %v1006 = vld [vmem:[#allocation5] sm:$0xff]
        %v1007 = vld [vmem:[#allocation5 + $0x8] sm:$0xff]
        %v1008 = vld [vmem:[#allocation5 + $0x10] sm:$0xff]
        %v1009 = vld [vmem:[#allocation5 + $0x18] sm:$0xff]
        %v1010 = vld [vmem:[#allocation5 + $0x20] sm:$0xff]
        %v1011 = vld [vmem:[#allocation5 + $0x28] sm:$0xff]
        %v1012 = vld [vmem:[#allocation5 + $0x30] sm:$0xff]
        %v1013 = vld [vmem:[#allocation5 + $0x38] sm:$0xff]
        %v1014 = vld [vmem:[#allocation5 + $0x40] sm:$0xff]
        %v1015 = vld [vmem:[#allocation5 + $0x48] sm:$0xff]
        %v1016 = vld [vmem:[#allocation5 + $0x50] sm:$0xff]
        %v1017 = vld [vmem:[#allocation5 + $0x58] sm:$0xff]
        %v1018 = vld [vmem:[#allocation5 + $0x60] sm:$0xff]
        %v1019 = vld [vmem:[#allocation5 + $0x68] sm:$0xff]
        %v1020 = vld [vmem:[#allocation5 + $0x70] sm:$0xff]
        %v1021 = vld [vmem:[#allocation5 + $0x78] sm:$0xff]
        %v1022 = vld [vmem:[#allocation5 + $0x80] sm:$0xff]
        %v1023 = vld [vmem:[#allocation5 + $0x88] sm:$0xff]
        %v1024 = vld [vmem:[#allocation5 + $0x90] sm:$0xff]
        %v1025 = vld [vmem:[#allocation5 + $0x98] sm:$0xff]
        %v1026 = vld [vmem:[#allocation5 + $0xa0] sm:$0xff]
        %v1027 = vld [vmem:[#allocation5 + $0xa8] sm:$0xff]
        %v1028 = vld [vmem:[#allocation5 + $0xb0] sm:$0xff]
        %v1029 = vld [vmem:[#allocation5 + $0xb8] sm:$0xff]
        %v1030 = vld [vmem:[#allocation5 + $0xc0] sm:$0xff]
        %v1031 = vld [vmem:[#allocation5 + $0xc8] sm:$0xff]
        %v1032 = vld [vmem:[#allocation5 + $0xd0] sm:$0xff]
        %v1033 = vld [vmem:[#allocation5 + $0xd8] sm:$0xff]
        %v1034 = vld [vmem:[#allocation5 + $0xe0] sm:$0xff]
        %v1035 = vld [vmem:[#allocation5 + $0xe8] sm:$0xff]
        %v1036 = vld [vmem:[#allocation5 + $0xf0] sm:$0xff]
        %v1037 = vld [vmem:[#allocation5 + $0xf8] sm:$0xff]
        %v1038 = vld [vmem:[#allocation5 + $0x100] sm:$0xff]
        %v1039 = vld [vmem:[#allocation5 + $0x108] sm:$0xff]
        %v1040 = vld [vmem:[#allocation5 + $0x110] sm:$0xff]
        %v1041 = vld [vmem:[#allocation5 + $0x118] sm:$0xff]
        %v1042 = vld [vmem:[#allocation5 + $0x120] sm:$0xff]
        %v1043 = vld [vmem:[#allocation5 + $0x128] sm:$0xff]
        %v1044 = vld [vmem:[#allocation5 + $0x130] sm:$0xff]
        %v1045 = vld [vmem:[#allocation5 + $0x138] sm:$0xff]
        %v1046 = vld [vmem:[#allocation5 + $0x140] sm:$0xff]
        %v1047 = vld [vmem:[#allocation5 + $0x148] sm:$0xff]
        %v1048 = vld [vmem:[#allocation5 + $0x150] sm:$0xff]
        %v1049 = vld [vmem:[#allocation5 + $0x158] sm:$0xff]
        %v1050 = vld [vmem:[#allocation5 + $0x160] sm:$0xff]
        %v1051 = vld [vmem:[#allocation5 + $0x168] sm:$0xff]
        %v1052 = vld [vmem:[#allocation5 + $0x170] sm:$0xff]
        %v1053 = vld [vmem:[#allocation5 + $0x178] sm:$0xff]
        %v1054 = vld [vmem:[#allocation5 + $0x180] sm:$0xff]
        %v1055 = vld [vmem:[#allocation5 + $0x188] sm:$0xff]
        %v1056 = vld [vmem:[#allocation5 + $0x190] sm:$0xff]
        %v1057 = vld [vmem:[#allocation5 + $0x198] sm:$0xff]
        %v1058 = vld [vmem:[#allocation5 + $0x1a0] sm:$0xff]
        %v1059 = vld [vmem:[#allocation5 + $0x1a8] sm:$0xff]
        %v1060 = vld [vmem:[#allocation5 + $0x1b0] sm:$0xff]
        %v1061 = vld [vmem:[#allocation5 + $0x1b8] sm:$0xff]
        %v1062 = vld [vmem:[#allocation5 + $0x1c0] sm:$0xff]
        %v1063 = vld [vmem:[#allocation5 + $0x1c8] sm:$0xff]
        %v1064 = vld [vmem:[#allocation5 + $0x1d0] sm:$0xff]
        %v1065 = vld [vmem:[#allocation5 + $0x1d8] sm:$0xff]
        %v1066 = vld [vmem:[#allocation5 + $0x1e0] sm:$0xff]
        %v1067 = vld [vmem:[#allocation5 + $0x1e8] sm:$0xff]
        %v1068 = vld [vmem:[#allocation5 + $0x1f0] sm:$0xff]
        %v1069 = vld [vmem:[#allocation5 + $0x1f8] sm:$0xff]
        %v1070 = vld [vmem:[#allocation7] sm:$0xff]
        %v1071 = vld [vmem:[#allocation7 + $0x8] sm:$0xff]
        %v1072 = vld [vmem:[#allocation7 + $0x10] sm:$0xff]
        %v1073 = vld [vmem:[#allocation7 + $0x18] sm:$0xff]
        %v1074 = vld [vmem:[#allocation7 + $0x20] sm:$0xff]
        %v1075 = vld [vmem:[#allocation7 + $0x28] sm:$0xff]
        %v1076 = vld [vmem:[#allocation7 + $0x30] sm:$0xff]
        %v1077 = vld [vmem:[#allocation7 + $0x38] sm:$0xff]
        %1079 = vset.pattern.permute.xlu0 0
        %1080 = vperm.xlu0 %1079, %v1070
        %v1081 = vpop.permute.xlu0 %1080
        %1084 = vset.pattern.permute.xlu0 0
        %1085 = vperm.xlu0 %1084, %v1071
        %v1086 = vpop.permute.xlu0 %1085
        %1089 = vset.pattern.permute.xlu0 0
        %1090 = vperm.xlu0 %1089, %v1072
        %v1091 = vpop.permute.xlu0 %1090
        %1094 = vset.pattern.permute.xlu0 0
        %1095 = vperm.xlu0 %1094, %v1073
        %v1096 = vpop.permute.xlu0 %1095
        %1099 = vset.pattern.permute.xlu0 0
        %1100 = vperm.xlu0 %1099, %v1074
        %v1101 = vpop.permute.xlu0 %1100
        %1104 = vset.pattern.permute.xlu0 0
        %1105 = vperm.xlu0 %1104, %v1075
        %v1106 = vpop.permute.xlu0 %1105
        %1109 = vset.pattern.permute.xlu0 0
        %1110 = vperm.xlu0 %1109, %v1076
        %v1111 = vpop.permute.xlu0 %1110
        %1114 = vset.pattern.permute.xlu0 0
        %1115 = vperm.xlu0 %1114, %v1077
        %v1116 = vpop.permute.xlu0 %1115
        %v1182 = vunpack.c.l.b16 %v1006
        %v1183 = vunpack.c.h.b16 %v1006
        %v1184 = vunpack.c.l.b16 %v1007
        %v1185 = vunpack.c.h.b16 %v1007
        %v1186 = vunpack.c.l.b16 %v1008
        %v1187 = vunpack.c.h.b16 %v1008
        %v1188 = vunpack.c.l.b16 %v1009
        %v1189 = vunpack.c.h.b16 %v1009
        %v1190 = vunpack.c.l.b16 %v1010
        %v1191 = vunpack.c.h.b16 %v1010
        %v1192 = vunpack.c.l.b16 %v1011
        %v1193 = vunpack.c.h.b16 %v1011
        %v1194 = vunpack.c.l.b16 %v1012
        %v1195 = vunpack.c.h.b16 %v1012
        %v1196 = vunpack.c.l.b16 %v1013
        %v1197 = vunpack.c.h.b16 %v1013
        %v1198 = vunpack.c.l.b16 %v1014
        %v1199 = vunpack.c.h.b16 %v1014
        %v1200 = vunpack.c.l.b16 %v1015
        %v1201 = vunpack.c.h.b16 %v1015
        %v1202 = vunpack.c.l.b16 %v1016
        %v1203 = vunpack.c.h.b16 %v1016
        %v1204 = vunpack.c.l.b16 %v1017
        %v1205 = vunpack.c.h.b16 %v1017
        %v1206 = vunpack.c.l.b16 %v1018
        %v1207 = vunpack.c.h.b16 %v1018
        %v1208 = vunpack.c.l.b16 %v1019
        %v1209 = vunpack.c.h.b16 %v1019
        %v1210 = vunpack.c.l.b16 %v1020
        %v1211 = vunpack.c.h.b16 %v1020
        %v1212 = vunpack.c.l.b16 %v1021
        %v1213 = vunpack.c.h.b16 %v1021
        %v1214 = vunpack.c.l.b16 %v1022
        %v1215 = vunpack.c.h.b16 %v1022
        %v1216 = vunpack.c.l.b16 %v1023
        %v1217 = vunpack.c.h.b16 %v1023
        %v1218 = vunpack.c.l.b16 %v1024
        %v1219 = vunpack.c.h.b16 %v1024
        %v1220 = vunpack.c.l.b16 %v1025
        %v1221 = vunpack.c.h.b16 %v1025
        %v1222 = vunpack.c.l.b16 %v1026
        %v1223 = vunpack.c.h.b16 %v1026
        %v1224 = vunpack.c.l.b16 %v1027
        %v1225 = vunpack.c.h.b16 %v1027
        %v1226 = vunpack.c.l.b16 %v1028
        %v1227 = vunpack.c.h.b16 %v1028
        %v1228 = vunpack.c.l.b16 %v1029
        %v1229 = vunpack.c.h.b16 %v1029
        %v1230 = vunpack.c.l.b16 %v1030
        %v1231 = vunpack.c.h.b16 %v1030
        %v1232 = vunpack.c.l.b16 %v1031
        %v1233 = vunpack.c.h.b16 %v1031
        %v1234 = vunpack.c.l.b16 %v1032
        %v1235 = vunpack.c.h.b16 %v1032
        %v1236 = vunpack.c.l.b16 %v1033
        %v1237 = vunpack.c.h.b16 %v1033
        %v1238 = vunpack.c.l.b16 %v1034
        %v1239 = vunpack.c.h.b16 %v1034
        %v1240 = vunpack.c.l.b16 %v1035
        %v1241 = vunpack.c.h.b16 %v1035
        %v1242 = vunpack.c.l.b16 %v1036
        %v1243 = vunpack.c.h.b16 %v1036
        %v1244 = vunpack.c.l.b16 %v1037
        %v1245 = vunpack.c.h.b16 %v1037
        %v1246 = vunpack.c.l.b16 %v1038
        %v1247 = vunpack.c.h.b16 %v1038
        %v1248 = vunpack.c.l.b16 %v1039
        %v1249 = vunpack.c.h.b16 %v1039
        %v1250 = vunpack.c.l.b16 %v1040
        %v1251 = vunpack.c.h.b16 %v1040
        %v1252 = vunpack.c.l.b16 %v1041
        %v1253 = vunpack.c.h.b16 %v1041
        %v1254 = vunpack.c.l.b16 %v1042
        %v1255 = vunpack.c.h.b16 %v1042
        %v1256 = vunpack.c.l.b16 %v1043
        %v1257 = vunpack.c.h.b16 %v1043
        %v1258 = vunpack.c.l.b16 %v1044
        %v1259 = vunpack.c.h.b16 %v1044
        %v1260 = vunpack.c.l.b16 %v1045
        %v1261 = vunpack.c.h.b16 %v1045
        %v1262 = vunpack.c.l.b16 %v1046
        %v1263 = vunpack.c.h.b16 %v1046
        %v1264 = vunpack.c.l.b16 %v1047
        %v1265 = vunpack.c.h.b16 %v1047
        %v1266 = vunpack.c.l.b16 %v1048
        %v1267 = vunpack.c.h.b16 %v1048
        %v1268 = vunpack.c.l.b16 %v1049
        %v1269 = vunpack.c.h.b16 %v1049
        %v1270 = vunpack.c.l.b16 %v1050
        %v1271 = vunpack.c.h.b16 %v1050
        %v1272 = vunpack.c.l.b16 %v1051
        %v1273 = vunpack.c.h.b16 %v1051
        %v1274 = vunpack.c.l.b16 %v1052
        %v1275 = vunpack.c.h.b16 %v1052
        %v1276 = vunpack.c.l.b16 %v1053
        %v1277 = vunpack.c.h.b16 %v1053
        %v1278 = vunpack.c.l.b16 %v1054
        %v1279 = vunpack.c.h.b16 %v1054
        %v1280 = vunpack.c.l.b16 %v1055
        %v1281 = vunpack.c.h.b16 %v1055
        %v1282 = vunpack.c.l.b16 %v1056
        %v1283 = vunpack.c.h.b16 %v1056
        %v1284 = vunpack.c.l.b16 %v1057
        %v1285 = vunpack.c.h.b16 %v1057
        %v1286 = vunpack.c.l.b16 %v1058
        %v1287 = vunpack.c.h.b16 %v1058
        %v1288 = vunpack.c.l.b16 %v1059
        %v1289 = vunpack.c.h.b16 %v1059
        %v1290 = vunpack.c.l.b16 %v1060
        %v1291 = vunpack.c.h.b16 %v1060
        %v1292 = vunpack.c.l.b16 %v1061
        %v1293 = vunpack.c.h.b16 %v1061
        %v1294 = vunpack.c.l.b16 %v1062
        %v1295 = vunpack.c.h.b16 %v1062
        %v1296 = vunpack.c.l.b16 %v1063
        %v1297 = vunpack.c.h.b16 %v1063
        %v1298 = vunpack.c.l.b16 %v1064
        %v1299 = vunpack.c.h.b16 %v1064
        %v1300 = vunpack.c.l.b16 %v1065
        %v1301 = vunpack.c.h.b16 %v1065
        %v1302 = vunpack.c.l.b16 %v1066
        %v1303 = vunpack.c.h.b16 %v1066
        %v1304 = vunpack.c.l.b16 %v1067
        %v1305 = vunpack.c.h.b16 %v1067
        %v1306 = vunpack.c.l.b16 %v1068
        %v1307 = vunpack.c.h.b16 %v1068
        %v1308 = vunpack.c.l.b16 %v1069
        %v1309 = vunpack.c.h.b16 %v1069
        %v1310 = vpack.c.b16 %v1198, %v1182
        %v1311 = vpack.c.b16 %v1199, %v1183
        %v1312 = vpack.c.b16 %v1200, %v1184
        %v1313 = vpack.c.b16 %v1201, %v1185
        %v1314 = vpack.c.b16 %v1202, %v1186
        %v1315 = vpack.c.b16 %v1203, %v1187
        %v1316 = vpack.c.b16 %v1204, %v1188
        %v1317 = vpack.c.b16 %v1205, %v1189
        %v1318 = vpack.c.b16 %v1206, %v1190
        %v1319 = vpack.c.b16 %v1207, %v1191
        %v1320 = vpack.c.b16 %v1208, %v1192
        %v1321 = vpack.c.b16 %v1209, %v1193
        %v1322 = vpack.c.b16 %v1210, %v1194
        %v1323 = vpack.c.b16 %v1211, %v1195
        %v1324 = vpack.c.b16 %v1212, %v1196
        %v1325 = vpack.c.b16 %v1213, %v1197
        %v1326 = vpack.c.b16 %v1230, %v1214
        %v1327 = vpack.c.b16 %v1231, %v1215
        %v1328 = vpack.c.b16 %v1232, %v1216
        %v1329 = vpack.c.b16 %v1233, %v1217
        %v1330 = vpack.c.b16 %v1234, %v1218
        %v1331 = vpack.c.b16 %v1235, %v1219
        %v1332 = vpack.c.b16 %v1236, %v1220
        %v1333 = vpack.c.b16 %v1237, %v1221
        %v1334 = vpack.c.b16 %v1238, %v1222
        %v1335 = vpack.c.b16 %v1239, %v1223
        %v1336 = vpack.c.b16 %v1240, %v1224
        %v1337 = vpack.c.b16 %v1241, %v1225
        %v1338 = vpack.c.b16 %v1242, %v1226
        %v1339 = vpack.c.b16 %v1243, %v1227
        %v1340 = vpack.c.b16 %v1244, %v1228
        %v1341 = vpack.c.b16 %v1245, %v1229
        %v1342 = vpack.c.b16 %v1262, %v1246
        %v1343 = vpack.c.b16 %v1263, %v1247
        %v1344 = vpack.c.b16 %v1264, %v1248
        %v1345 = vpack.c.b16 %v1265, %v1249
        %v1346 = vpack.c.b16 %v1266, %v1250
        %v1347 = vpack.c.b16 %v1267, %v1251
        %v1348 = vpack.c.b16 %v1268, %v1252
        %v1349 = vpack.c.b16 %v1269, %v1253
        %v1350 = vpack.c.b16 %v1270, %v1254
        %v1351 = vpack.c.b16 %v1271, %v1255
        %v1352 = vpack.c.b16 %v1272, %v1256
        %v1353 = vpack.c.b16 %v1273, %v1257
        %v1354 = vpack.c.b16 %v1274, %v1258
        %v1355 = vpack.c.b16 %v1275, %v1259
        %v1356 = vpack.c.b16 %v1276, %v1260
        %v1357 = vpack.c.b16 %v1277, %v1261
        %v1358 = vpack.c.b16 %v1294, %v1278
        %v1359 = vpack.c.b16 %v1295, %v1279
        %v1360 = vpack.c.b16 %v1296, %v1280
        %v1361 = vpack.c.b16 %v1297, %v1281
        %v1362 = vpack.c.b16 %v1298, %v1282
        %v1363 = vpack.c.b16 %v1299, %v1283
        %v1364 = vpack.c.b16 %v1300, %v1284
        %v1365 = vpack.c.b16 %v1301, %v1285
        %v1366 = vpack.c.b16 %v1302, %v1286
        %v1367 = vpack.c.b16 %v1303, %v1287
        %v1368 = vpack.c.b16 %v1304, %v1288
        %v1369 = vpack.c.b16 %v1305, %v1289
        %v1370 = vpack.c.b16 %v1306, %v1290
        %v1371 = vpack.c.b16 %v1307, %v1291
        %v1372 = vpack.c.b16 %v1308, %v1292
        %v1373 = vpack.c.b16 %v1309, %v1293
        %1438 = vmatprep.subr.bf16.mxu0 %v751
        %1439 = vmatpush1.bf16.msra.mxu0 %v750
        %1440 = vmatprep.subr.bf16.mxu0 %v753
        %1441 = vmatpush1.bf16.msra.mxu0 %v752
        %1442 = vmatprep.subr.bf16.mxu0 %v755
        %1443 = vmatpush1.bf16.msra.mxu0 %v754
        %1444 = vmatprep.subr.bf16.mxu0 %v757
        %1445 = vmatpush1.bf16.msra.mxu0 %v756
        %1446 = vmatprep.subr.bf16.mxu0 %v759
        %1447 = vmatpush1.bf16.msra.mxu0 %v758
        %1448 = vmatprep.subr.bf16.mxu0 %v761
        %1449 = vmatpush1.bf16.msra.mxu0 %v760
        %1450 = vmatprep.subr.bf16.mxu0 %v763
        %1451 = vmatpush1.bf16.msra.mxu0 %v762
        %1452 = vmatprep.subr.bf16.mxu0 %v765
        %1453 = vmatpush1.bf16.msra.mxu0 %v764
        %1454 = vmatprep.subr.bf16.mxu0 %v767
        %1455 = vmatpush1.bf16.msra.mxu0 %v766
        %1456 = vmatprep.subr.bf16.mxu0 %v769
        %1457 = vmatpush1.bf16.msra.mxu0 %v768
        %1458 = vmatprep.subr.bf16.mxu0 %v771
        %1459 = vmatpush1.bf16.msra.mxu0 %v770
        %1460 = vmatprep.subr.bf16.mxu0 %v773
        %1461 = vmatpush1.bf16.msra.mxu0 %v772
        %1462 = vmatprep.subr.bf16.mxu0 %v775
        %1463 = vmatpush1.bf16.msra.mxu0 %v774
        %1464 = vmatprep.subr.bf16.mxu0 %v777
        %1465 = vmatpush1.bf16.msra.mxu0 %v776
        %1466 = vmatprep.subr.bf16.mxu0 %v779
        %1467 = vmatpush1.bf16.msra.mxu0 %v778
        %1468 = vmatprep.subr.bf16.mxu0 %v781
        %1469 = vmatpush1.bf16.msra.mxu0 %v780
        %1470 = vmatprep.mubr.bf16.mxu0 %v1311
        %1471 = vmatmul.mubr.bf16.gmra.mrb[0].mxu0 %v1310
        %v1472 = vpop.f32.mrb[0].mxu0
        %v1473 = vadd.f32 %v1081, %v1472
        %v1474 = vpop.f32.mrb[0].mxu0
        %v1475 = vadd.f32 %v1081, %v1474
        %v1476 = vpop.f32.mrb[0].mxu0
        %v1477 = vadd.f32 %v1086, %v1476
        %v1478 = vpop.f32.mrb[0].mxu0
        %v1479 = vadd.f32 %v1086, %v1478
        %1480 = vmatprep.mubr.bf16.mxu0 %v1327
        %1481 = vmatmul.mubr.bf16.gmra.mrb[0].mxu0 %v1326
        %v1482 = vpop.f32.mrb[0].mxu0
        %v1483 = vadd.f32 %v1091, %v1482
        %v1484 = vpop.f32.mrb[0].mxu0
        %v1485 = vadd.f32 %v1091, %v1484
        %v1486 = vpop.f32.mrb[0].mxu0
        %v1487 = vadd.f32 %v1096, %v1486
        %v1488 = vpop.f32.mrb[0].mxu0
        %v1489 = vadd.f32 %v1096, %v1488
        %1490 = vmatprep.mubr.bf16.mxu0 %v1343
        %1491 = vmatmul.mubr.bf16.gmra.mrb[0].mxu0 %v1342
        %v1492 = vpop.f32.mrb[0].mxu0
        %v1493 = vadd.f32 %v1101, %v1492
        %v1494 = vpop.f32.mrb[0].mxu0
        %v1495 = vadd.f32 %v1101, %v1494
        %v1496 = vpop.f32.mrb[0].mxu0
        %v1497 = vadd.f32 %v1106, %v1496
        %v1498 = vpop.f32.mrb[0].mxu0
        %v1499 = vadd.f32 %v1106, %v1498
        %1500 = vmatprep.mubr.bf16.mxu0 %v1359
        %1501 = vmatmul.mubr.bf16.gmra.mrb[0].mxu0 %v1358
        %v1502 = vpop.f32.mrb[0].mxu0
        %v1503 = vadd.f32 %v1111, %v1502
        %v1504 = vpop.f32.mrb[0].mxu0
        %v1505 = vadd.f32 %v1111, %v1504
        %v1506 = vpop.f32.mrb[0].mxu0
        %v1507 = vadd.f32 %v1116, %v1506
        %v1508 = vpop.f32.mrb[0].mxu0
        %v1509 = vadd.f32 %v1116, %v1508
        %1510 = vdwg.mxu0
        %1511 = vmatprep.subr.bf16.mxu0 %v783
        %1512 = vmatpush1.bf16.msra.mxu0 %v782
        %1513 = vmatprep.subr.bf16.mxu0 %v785
        %1514 = vmatpush1.bf16.msra.mxu0 %v784
        %1515 = vmatprep.subr.bf16.mxu0 %v787
        %1516 = vmatpush1.bf16.msra.mxu0 %v786
        %1517 = vmatprep.subr.bf16.mxu0 %v789
        %1518 = vmatpush1.bf16.msra.mxu0 %v788
        %1519 = vmatprep.subr.bf16.mxu0 %v791
        %1520 = vmatpush1.bf16.msra.mxu0 %v790
        %1521 = vmatprep.subr.bf16.mxu0 %v793
        %1522 = vmatpush1.bf16.msra.mxu0 %v792
        %1523 = vmatprep.subr.bf16.mxu0 %v795
        %1524 = vmatpush1.bf16.msra.mxu0 %v794
        %1525 = vmatprep.subr.bf16.mxu0 %v797
        %1526 = vmatpush1.bf16.msra.mxu0 %v796
        %1527 = vmatprep.subr.bf16.mxu0 %v799
        %1528 = vmatpush1.bf16.msra.mxu0 %v798
        %1529 = vmatprep.subr.bf16.mxu0 %v801
        %1530 = vmatpush1.bf16.msra.mxu0 %v800
        %1531 = vmatprep.subr.bf16.mxu0 %v803
        %1532 = vmatpush1.bf16.msra.mxu0 %v802
        %1533 = vmatprep.subr.bf16.mxu0 %v805
        %1534 = vmatpush1.bf16.msra.mxu0 %v804
        %1535 = vmatprep.subr.bf16.mxu0 %v807
        %1536 = vmatpush1.bf16.msra.mxu0 %v806
        %1537 = vmatprep.subr.bf16.mxu0 %v809
        %1538 = vmatpush1.bf16.msra.mxu0 %v808
        %1539 = vmatprep.subr.bf16.mxu0 %v811
        %1540 = vmatpush1.bf16.msra.mxu0 %v810
        %1541 = vmatprep.subr.bf16.mxu0 %v813
        %1542 = vmatpush1.bf16.msra.mxu0 %v812
        %1543 = vmatprep.mubr.bf16.mxu0 %v1313
        %1544 = vmatmul.mubr.bf16.gmra.mrb[0].mxu0 %v1312
        %v1545 = vpop.f32.mrb[0].mxu0
        %v1546 = vadd.f32 %v1473, %v1545
        %v1547 = vpop.f32.mrb[0].mxu0
        %v1548 = vadd.f32 %v1475, %v1547
        %v1549 = vpop.f32.mrb[0].mxu0
        %v1550 = vadd.f32 %v1477, %v1549
        %v1551 = vpop.f32.mrb[0].mxu0
        %v1552 = vadd.f32 %v1479, %v1551
        %1553 = vmatprep.mubr.bf16.mxu0 %v1329
        %1554 = vmatmul.mubr.bf16.gmra.mrb[0].mxu0 %v1328
        %v1555 = vpop.f32.mrb[0].mxu0
        %v1556 = vadd.f32 %v1483, %v1555
        %v1557 = vpop.f32.mrb[0].mxu0
        %v1558 = vadd.f32 %v1485, %v1557
        %v1559 = vpop.f32.mrb[0].mxu0
        %v1560 = vadd.f32 %v1487, %v1559
        %v1561 = vpop.f32.mrb[0].mxu0
        %v1562 = vadd.f32 %v1489, %v1561
        %1563 = vmatprep.mubr.bf16.mxu0 %v1345
        %1564 = vmatmul.mubr.bf16.gmra.mrb[0].mxu0 %v1344
        %v1565 = vpop.f32.mrb[0].mxu0
        %v1566 = vadd.f32 %v1493, %v1565
        %v1567 = vpop.f32.mrb[0].mxu0
        %v1568 = vadd.f32 %v1495, %v1567
        %v1569 = vpop.f32.mrb[0].mxu0
        %v1570 = vadd.f32 %v1497, %v1569
        %v1571 = vpop.f32.mrb[0].mxu0
        %v1572 = vadd.f32 %v1499, %v1571
        %1573 = vmatprep.mubr.bf16.mxu0 %v1361
        %1574 = vmatmul.mubr.bf16.gmra.mrb[0].mxu0 %v1360
        %v1575 = vpop.f32.mrb[0].mxu0
        %v1576 = vadd.f32 %v1503, %v1575
        %v1577 = vpop.f32.mrb[0].mxu0
        %v1578 = vadd.f32 %v1505, %v1577
        %v1579 = vpop.f32.mrb[0].mxu0
        %v1580 = vadd.f32 %v1507, %v1579
        %v1581 = vpop.f32.mrb[0].mxu0
        %v1582 = vadd.f32 %v1509, %v1581
        %1583 = vdwg.mxu0
        %1584 = vmatprep.subr.bf16.mxu0 %v815
        %1585 = vmatpush1.bf16.msra.mxu0 %v814
        %1586 = vmatprep.subr.bf16.mxu0 %v817
        %1587 = vmatpush1.bf16.msra.mxu0 %v816
        %1588 = vmatprep.subr.bf16.mxu0 %v819
        %1589 = vmatpush1.bf16.msra.mxu0 %v818
        %1590 = vmatprep.subr.bf16.mxu0 %v821
        %1591 = vmatpush1.bf16.msra.mxu0 %v820
        %1592 = vmatprep.subr.bf16.mxu0 %v823
        %1593 = vmatpush1.bf16.msra.mxu0 %v822
        %1594 = vmatprep.subr.bf16.mxu0 %v825
        %1595 = vmatpush1.bf16.msra.mxu0 %v824
        %1596 = vmatprep.subr.bf16.mxu0 %v827
        %1597 = vmatpush1.bf16.msra.mxu0 %v826
        %1598 = vmatprep.subr.bf16.mxu0 %v829
        %1599 = vmatpush1.bf16.msra.mxu0 %v828
        %1600 = vmatprep.subr.bf16.mxu0 %v831
        %1601 = vmatpush1.bf16.msra.mxu0 %v830
        %1602 = vmatprep.subr.bf16.mxu0 %v833
        %1603 = vmatpush1.bf16.msra.mxu0 %v832
        %1604 = vmatprep.subr.bf16.mxu0 %v835
        %1605 = vmatpush1.bf16.msra.mxu0 %v834
        %1606 = vmatprep.subr.bf16.mxu0 %v837
        %1607 = vmatpush1.bf16.msra.mxu0 %v836
        %1608 = vmatprep.subr.bf16.mxu0 %v839
        %1609 = vmatpush1.bf16.msra.mxu0 %v838
        %1610 = vmatprep.subr.bf16.mxu0 %v841
        %1611 = vmatpush1.bf16.msra.mxu0 %v840
        %1612 = vmatprep.subr.bf16.mxu0 %v843
        %1613 = vmatpush1.bf16.msra.mxu0 %v842
        %1614 = vmatprep.subr.bf16.mxu0 %v845
        %1615 = vmatpush1.bf16.msra.mxu0 %v844
        %1616 = vmatprep.mubr.bf16.mxu0 %v1315
        %1617 = vmatmul.mubr.bf16.gmra.mrb[0].mxu0 %v1314
        %v1618 = vpop.f32.mrb[0].mxu0
        %v1619 = vadd.f32 %v1546, %v1618
        %v1620 = vpop.f32.mrb[0].mxu0
        %v1621 = vadd.f32 %v1548, %v1620
        %v1622 = vpop.f32.mrb[0].mxu0
        %v1623 = vadd.f32 %v1550, %v1622
        %v1624 = vpop.f32.mrb[0].mxu0
        %v1625 = vadd.f32 %v1552, %v1624
        %1626 = vmatprep.mubr.bf16.mxu0 %v1331
        %1627 = vmatmul.mubr.bf16.gmra.mrb[0].mxu0 %v1330
        %v1628 = vpop.f32.mrb[0].mxu0
        %v1629 = vadd.f32 %v1556, %v1628
        %v1630 = vpop.f32.mrb[0].mxu0
        %v1631 = vadd.f32 %v1558, %v1630
        %v1632 = vpop.f32.mrb[0].mxu0
        %v1633 = vadd.f32 %v1560, %v1632
        %v1634 = vpop.f32.mrb[0].mxu0
        %v1635 = vadd.f32 %v1562, %v1634
        %1636 = vmatprep.mubr.bf16.mxu0 %v1347
        %1637 = vmatmul.mubr.bf16.gmra.mrb[0].mxu0 %v1346
        %v1638 = vpop.f32.mrb[0].mxu0
        %v1639 = vadd.f32 %v1566, %v1638
        %v1640 = vpop.f32.mrb[0].mxu0
        %v1641 = vadd.f32 %v1568, %v1640
        %v1642 = vpop.f32.mrb[0].mxu0
        %v1643 = vadd.f32 %v1570, %v1642
        %v1644 = vpop.f32.mrb[0].mxu0
        %v1645 = vadd.f32 %v1572, %v1644
        %1646 = vmatprep.mubr.bf16.mxu0 %v1363
        %1647 = vmatmul.mubr.bf16.gmra.mrb[0].mxu0 %v1362
        %v1648 = vpop.f32.mrb[0].mxu0
        %v1649 = vadd.f32 %v1576, %v1648
        %v1650 = vpop.f32.mrb[0].mxu0
        %v1651 = vadd.f32 %v1578, %v1650
        %v1652 = vpop.f32.mrb[0].mxu0
        %v1653 = vadd.f32 %v1580, %v1652
        %v1654 = vpop.f32.mrb[0].mxu0
        %v1655 = vadd.f32 %v1582, %v1654
        %1656 = vdwg.mxu0
        %1657 = vmatprep.subr.bf16.mxu0 %v847
        %1658 = vmatpush1.bf16.msra.mxu0 %v846
        %1659 = vmatprep.subr.bf16.mxu0 %v849
        %1660 = vmatpush1.bf16.msra.mxu0 %v848
        %1661 = vmatprep.subr.bf16.mxu0 %v851
        %1662 = vmatpush1.bf16.msra.mxu0 %v850
        %1663 = vmatprep.subr.bf16.mxu0 %v853
        %1664 = vmatpush1.bf16.msra.mxu0 %v852
        %1665 = vmatprep.subr.bf16.mxu0 %v855
        %1666 = vmatpush1.bf16.msra.mxu0 %v854
        %1667 = vmatprep.subr.bf16.mxu0 %v857
        %1668 = vmatpush1.bf16.msra.mxu0 %v856
        %1669 = vmatprep.subr.bf16.mxu0 %v859
        %1670 = vmatpush1.bf16.msra.mxu0 %v858
        %1671 = vmatprep.subr.bf16.mxu0 %v861
        %1672 = vmatpush1.bf16.msra.mxu0 %v860
        %1673 = vmatprep.subr.bf16.mxu0 %v863
        %1674 = vmatpush1.bf16.msra.mxu0 %v862
        %1675 = vmatprep.subr.bf16.mxu0 %v865
        %1676 = vmatpush1.bf16.msra.mxu0 %v864
        %1677 = vmatprep.subr.bf16.mxu0 %v867
        %1678 = vmatpush1.bf16.msra.mxu0 %v866
        %1679 = vmatprep.subr.bf16.mxu0 %v869
        %1680 = vmatpush1.bf16.msra.mxu0 %v868
        %1681 = vmatprep.subr.bf16.mxu0 %v871
        %1682 = vmatpush1.bf16.msra.mxu0 %v870
        %1683 = vmatprep.subr.bf16.mxu0 %v873
        %1684 = vmatpush1.bf16.msra.mxu0 %v872
        %1685 = vmatprep.subr.bf16.mxu0 %v875
        %1686 = vmatpush1.bf16.msra.mxu0 %v874
        %1687 = vmatprep.subr.bf16.mxu0 %v877
        %1688 = vmatpush1.bf16.msra.mxu0 %v876
        %1689 = vmatprep.mubr.bf16.mxu0 %v1317
        %1690 = vmatmul.mubr.bf16.gmra.mrb[0].mxu0 %v1316
        %v1691 = vpop.f32.mrb[0].mxu0
        %v1692 = vadd.f32 %v1619, %v1691
        %v1693 = vpop.f32.mrb[0].mxu0
        %v1694 = vadd.f32 %v1621, %v1693
        %v1695 = vpop.f32.mrb[0].mxu0
        %v1696 = vadd.f32 %v1623, %v1695
        %v1697 = vpop.f32.mrb[0].mxu0
        %v1698 = vadd.f32 %v1625, %v1697
        %1699 = vmatprep.mubr.bf16.mxu0 %v1333
        %1700 = vmatmul.mubr.bf16.gmra.mrb[0].mxu0 %v1332
        %v1701 = vpop.f32.mrb[0].mxu0
        %v1702 = vadd.f32 %v1629, %v1701
        %v1703 = vpop.f32.mrb[0].mxu0
        %v1704 = vadd.f32 %v1631, %v1703
        %v1705 = vpop.f32.mrb[0].mxu0
        %v1706 = vadd.f32 %v1633, %v1705
        %v1707 = vpop.f32.mrb[0].mxu0
        %v1708 = vadd.f32 %v1635, %v1707
        %1709 = vmatprep.mubr.bf16.mxu0 %v1349
        %1710 = vmatmul.mubr.bf16.gmra.mrb[0].mxu0 %v1348
        %v1711 = vpop.f32.mrb[0].mxu0
        %v1712 = vadd.f32 %v1639, %v1711
        %v1713 = vpop.f32.mrb[0].mxu0
        %v1714 = vadd.f32 %v1641, %v1713
        %v1715 = vpop.f32.mrb[0].mxu0
        %v1716 = vadd.f32 %v1643, %v1715
        %v1717 = vpop.f32.mrb[0].mxu0
        %v1718 = vadd.f32 %v1645, %v1717
        %1719 = vmatprep.mubr.bf16.mxu0 %v1365
        %1720 = vmatmul.mubr.bf16.gmra.mrb[0].mxu0 %v1364
        %v1721 = vpop.f32.mrb[0].mxu0
        %v1722 = vadd.f32 %v1649, %v1721
        %v1723 = vpop.f32.mrb[0].mxu0
        %v1724 = vadd.f32 %v1651, %v1723
        %v1725 = vpop.f32.mrb[0].mxu0
        %v1726 = vadd.f32 %v1653, %v1725
        %v1727 = vpop.f32.mrb[0].mxu0
        %v1728 = vadd.f32 %v1655, %v1727
        %1729 = vdwg.mxu0
        %1730 = vmatprep.subr.bf16.mxu0 %v879
        %1731 = vmatpush1.bf16.msra.mxu0 %v878
        %1732 = vmatprep.subr.bf16.mxu0 %v881
        %1733 = vmatpush1.bf16.msra.mxu0 %v880
        %1734 = vmatprep.subr.bf16.mxu0 %v883
        %1735 = vmatpush1.bf16.msra.mxu0 %v882
        %1736 = vmatprep.subr.bf16.mxu0 %v885
        %1737 = vmatpush1.bf16.msra.mxu0 %v884
        %1738 = vmatprep.subr.bf16.mxu0 %v887
        %1739 = vmatpush1.bf16.msra.mxu0 %v886
        %1740 = vmatprep.subr.bf16.mxu0 %v889
        %1741 = vmatpush1.bf16.msra.mxu0 %v888
        %1742 = vmatprep.subr.bf16.mxu0 %v891
        %1743 = vmatpush1.bf16.msra.mxu0 %v890
        %1744 = vmatprep.subr.bf16.mxu0 %v893
        %1745 = vmatpush1.bf16.msra.mxu0 %v892
        %1746 = vmatprep.subr.bf16.mxu0 %v895
        %1747 = vmatpush1.bf16.msra.mxu0 %v894
        %1748 = vmatprep.subr.bf16.mxu0 %v897
        %1749 = vmatpush1.bf16.msra.mxu0 %v896
        %1750 = vmatprep.subr.bf16.mxu0 %v899
        %1751 = vmatpush1.bf16.msra.mxu0 %v898
        %1752 = vmatprep.subr.bf16.mxu0 %v901
        %1753 = vmatpush1.bf16.msra.mxu0 %v900
        %1754 = vmatprep.subr.bf16.mxu0 %v903
        %1755 = vmatpush1.bf16.msra.mxu0 %v902
        %1756 = vmatprep.subr.bf16.mxu0 %v905
        %1757 = vmatpush1.bf16.msra.mxu0 %v904
        %1758 = vmatprep.subr.bf16.mxu0 %v907
        %1759 = vmatpush1.bf16.msra.mxu0 %v906
        %1760 = vmatprep.subr.bf16.mxu0 %v909
        %1761 = vmatpush1.bf16.msra.mxu0 %v908
        %1762 = vmatprep.mubr.bf16.mxu0 %v1319
        %1763 = vmatmul.mubr.bf16.gmra.mrb[0].mxu0 %v1318
        %v1764 = vpop.f32.mrb[0].mxu0
        %v1765 = vadd.f32 %v1692, %v1764
        %v1766 = vpop.f32.mrb[0].mxu0
        %v1767 = vadd.f32 %v1694, %v1766
        %v1768 = vpop.f32.mrb[0].mxu0
        %v1769 = vadd.f32 %v1696, %v1768
        %v1770 = vpop.f32.mrb[0].mxu0
        %v1771 = vadd.f32 %v1698, %v1770
        %1772 = vmatprep.mubr.bf16.mxu0 %v1335
        %1773 = vmatmul.mubr.bf16.gmra.mrb[0].mxu0 %v1334
        %v1774 = vpop.f32.mrb[0].mxu0
        %v1775 = vadd.f32 %v1702, %v1774
        %v1776 = vpop.f32.mrb[0].mxu0
        %v1777 = vadd.f32 %v1704, %v1776
        %v1778 = vpop.f32.mrb[0].mxu0
        %v1779 = vadd.f32 %v1706, %v1778
        %v1780 = vpop.f32.mrb[0].mxu0
        %v1781 = vadd.f32 %v1708, %v1780
        %1782 = vmatprep.mubr.bf16.mxu0 %v1351
        %1783 = vmatmul.mubr.bf16.gmra.mrb[0].mxu0 %v1350
        %v1784 = vpop.f32.mrb[0].mxu0
        %v1785 = vadd.f32 %v1712, %v1784
        %v1786 = vpop.f32.mrb[0].mxu0
        %v1787 = vadd.f32 %v1714, %v1786
        %v1788 = vpop.f32.mrb[0].mxu0
        %v1789 = vadd.f32 %v1716, %v1788
        %v1790 = vpop.f32.mrb[0].mxu0
        %v1791 = vadd.f32 %v1718, %v1790
        %1792 = vmatprep.mubr.bf16.mxu0 %v1367
        %1793 = vmatmul.mubr.bf16.gmra.mrb[0].mxu0 %v1366
        %v1794 = vpop.f32.mrb[0].mxu0
        %v1795 = vadd.f32 %v1722, %v1794
        %v1796 = vpop.f32.mrb[0].mxu0
        %v1797 = vadd.f32 %v1724, %v1796
        %v1798 = vpop.f32.mrb[0].mxu0
        %v1799 = vadd.f32 %v1726, %v1798
        %v1800 = vpop.f32.mrb[0].mxu0
        %v1801 = vadd.f32 %v1728, %v1800
        %1802 = vdwg.mxu0
        %1803 = vmatprep.subr.bf16.mxu0 %v911
        %1804 = vmatpush1.bf16.msra.mxu0 %v910
        %1805 = vmatprep.subr.bf16.mxu0 %v913
        %1806 = vmatpush1.bf16.msra.mxu0 %v912
        %1807 = vmatprep.subr.bf16.mxu0 %v915
        %1808 = vmatpush1.bf16.msra.mxu0 %v914
        %1809 = vmatprep.subr.bf16.mxu0 %v917
        %1810 = vmatpush1.bf16.msra.mxu0 %v916
        %1811 = vmatprep.subr.bf16.mxu0 %v919
        %1812 = vmatpush1.bf16.msra.mxu0 %v918
        %1813 = vmatprep.subr.bf16.mxu0 %v921
        %1814 = vmatpush1.bf16.msra.mxu0 %v920
        %1815 = vmatprep.subr.bf16.mxu0 %v923
        %1816 = vmatpush1.bf16.msra.mxu0 %v922
        %1817 = vmatprep.subr.bf16.mxu0 %v925
        %1818 = vmatpush1.bf16.msra.mxu0 %v924
        %1819 = vmatprep.subr.bf16.mxu0 %v927
        %1820 = vmatpush1.bf16.msra.mxu0 %v926
        %1821 = vmatprep.subr.bf16.mxu0 %v929
        %1822 = vmatpush1.bf16.msra.mxu0 %v928
        %1823 = vmatprep.subr.bf16.mxu0 %v931
        %1824 = vmatpush1.bf16.msra.mxu0 %v930
        %1825 = vmatprep.subr.bf16.mxu0 %v933
        %1826 = vmatpush1.bf16.msra.mxu0 %v932
        %1827 = vmatprep.subr.bf16.mxu0 %v935
        %1828 = vmatpush1.bf16.msra.mxu0 %v934
        %1829 = vmatprep.subr.bf16.mxu0 %v937
        %1830 = vmatpush1.bf16.msra.mxu0 %v936
        %1831 = vmatprep.subr.bf16.mxu0 %v939
        %1832 = vmatpush1.bf16.msra.mxu0 %v938
        %1833 = vmatprep.subr.bf16.mxu0 %v941
        %1834 = vmatpush1.bf16.msra.mxu0 %v940
        %1835 = vmatprep.mubr.bf16.mxu0 %v1321
        %1836 = vmatmul.mubr.bf16.gmra.mrb[0].mxu0 %v1320
        %v1837 = vpop.f32.mrb[0].mxu0
        %v1838 = vadd.f32 %v1765, %v1837
        %v1839 = vpop.f32.mrb[0].mxu0
        %v1840 = vadd.f32 %v1767, %v1839
        %v1841 = vpop.f32.mrb[0].mxu0
        %v1842 = vadd.f32 %v1769, %v1841
        %v1843 = vpop.f32.mrb[0].mxu0
        %v1844 = vadd.f32 %v1771, %v1843
        %1845 = vmatprep.mubr.bf16.mxu0 %v1337
        %1846 = vmatmul.mubr.bf16.gmra.mrb[0].mxu0 %v1336
        %v1847 = vpop.f32.mrb[0].mxu0
        %v1848 = vadd.f32 %v1775, %v1847
        %v1849 = vpop.f32.mrb[0].mxu0
        %v1850 = vadd.f32 %v1777, %v1849
        %v1851 = vpop.f32.mrb[0].mxu0
        %v1852 = vadd.f32 %v1779, %v1851
        %v1853 = vpop.f32.mrb[0].mxu0
        %v1854 = vadd.f32 %v1781, %v1853
        %1855 = vmatprep.mubr.bf16.mxu0 %v1353
        %1856 = vmatmul.mubr.bf16.gmra.mrb[0].mxu0 %v1352
        %v1857 = vpop.f32.mrb[0].mxu0
        %v1858 = vadd.f32 %v1785, %v1857
        %v1859 = vpop.f32.mrb[0].mxu0
        %v1860 = vadd.f32 %v1787, %v1859
        %v1861 = vpop.f32.mrb[0].mxu0
        %v1862 = vadd.f32 %v1789, %v1861
        %v1863 = vpop.f32.mrb[0].mxu0
        %v1864 = vadd.f32 %v1791, %v1863
        %1865 = vmatprep.mubr.bf16.mxu0 %v1369
        %1866 = vmatmul.mubr.bf16.gmra.mrb[0].mxu0 %v1368
        %v1867 = vpop.f32.mrb[0].mxu0
        %v1868 = vadd.f32 %v1795, %v1867
        %v1869 = vpop.f32.mrb[0].mxu0
        %v1870 = vadd.f32 %v1797, %v1869
        %v1871 = vpop.f32.mrb[0].mxu0
        %v1872 = vadd.f32 %v1799, %v1871
        %v1873 = vpop.f32.mrb[0].mxu0
        %v1874 = vadd.f32 %v1801, %v1873
        %1875 = vdwg.mxu0
        %1876 = vmatprep.subr.bf16.mxu0 %v943
        %1877 = vmatpush1.bf16.msra.mxu0 %v942
        %1878 = vmatprep.subr.bf16.mxu0 %v945
        %1879 = vmatpush1.bf16.msra.mxu0 %v944
        %1880 = vmatprep.subr.bf16.mxu0 %v947
        %1881 = vmatpush1.bf16.msra.mxu0 %v946
        %1882 = vmatprep.subr.bf16.mxu0 %v949
        %1883 = vmatpush1.bf16.msra.mxu0 %v948
        %1884 = vmatprep.subr.bf16.mxu0 %v951
        %1885 = vmatpush1.bf16.msra.mxu0 %v950
        %1886 = vmatprep.subr.bf16.mxu0 %v953
        %1887 = vmatpush1.bf16.msra.mxu0 %v952
        %1888 = vmatprep.subr.bf16.mxu0 %v955
        %1889 = vmatpush1.bf16.msra.mxu0 %v954
        %1890 = vmatprep.subr.bf16.mxu0 %v957
        %1891 = vmatpush1.bf16.msra.mxu0 %v956
        %1892 = vmatprep.subr.bf16.mxu0 %v959
        %1893 = vmatpush1.bf16.msra.mxu0 %v958
        %1894 = vmatprep.subr.bf16.mxu0 %v961
        %1895 = vmatpush1.bf16.msra.mxu0 %v960
        %1896 = vmatprep.subr.bf16.mxu0 %v963
        %1897 = vmatpush1.bf16.msra.mxu0 %v962
        %1898 = vmatprep.subr.bf16.mxu0 %v965
        %1899 = vmatpush1.bf16.msra.mxu0 %v964
        %1900 = vmatprep.subr.bf16.mxu0 %v967
        %1901 = vmatpush1.bf16.msra.mxu0 %v966
        %1902 = vmatprep.subr.bf16.mxu0 %v969
        %1903 = vmatpush1.bf16.msra.mxu0 %v968
        %1904 = vmatprep.subr.bf16.mxu0 %v971
        %1905 = vmatpush1.bf16.msra.mxu0 %v970
        %1906 = vmatprep.subr.bf16.mxu0 %v973
        %1907 = vmatpush1.bf16.msra.mxu0 %v972
        %1908 = vmatprep.mubr.bf16.mxu0 %v1323
        %1909 = vmatmul.mubr.bf16.gmra.mrb[0].mxu0 %v1322
        %v1910 = vpop.f32.mrb[0].mxu0
        %v1911 = vadd.f32 %v1838, %v1910
        %v1912 = vpop.f32.mrb[0].mxu0
        %v1913 = vadd.f32 %v1840, %v1912
        %v1914 = vpop.f32.mrb[0].mxu0
        %v1915 = vadd.f32 %v1842, %v1914
        %v1916 = vpop.f32.mrb[0].mxu0
        %v1917 = vadd.f32 %v1844, %v1916
        %1918 = vmatprep.mubr.bf16.mxu0 %v1339
        %1919 = vmatmul.mubr.bf16.gmra.mrb[0].mxu0 %v1338
        %v1920 = vpop.f32.mrb[0].mxu0
        %v1921 = vadd.f32 %v1848, %v1920
        %v1922 = vpop.f32.mrb[0].mxu0
        %v1923 = vadd.f32 %v1850, %v1922
        %v1924 = vpop.f32.mrb[0].mxu0
        %v1925 = vadd.f32 %v1852, %v1924
        %v1926 = vpop.f32.mrb[0].mxu0
        %v1927 = vadd.f32 %v1854, %v1926
        %1928 = vmatprep.mubr.bf16.mxu0 %v1355
        %1929 = vmatmul.mubr.bf16.gmra.mrb[0].mxu0 %v1354
        %v1930 = vpop.f32.mrb[0].mxu0
        %v1931 = vadd.f32 %v1858, %v1930
        %v1932 = vpop.f32.mrb[0].mxu0
        %v1933 = vadd.f32 %v1860, %v1932
        %v1934 = vpop.f32.mrb[0].mxu0
        %v1935 = vadd.f32 %v1862, %v1934
        %v1936 = vpop.f32.mrb[0].mxu0
        %v1937 = vadd.f32 %v1864, %v1936
        %1938 = vmatprep.mubr.bf16.mxu0 %v1371
        %1939 = vmatmul.mubr.bf16.gmra.mrb[0].mxu0 %v1370
        %v1940 = vpop.f32.mrb[0].mxu0
        %v1941 = vadd.f32 %v1868, %v1940
        %v1942 = vpop.f32.mrb[0].mxu0
        %v1943 = vadd.f32 %v1870, %v1942
        %v1944 = vpop.f32.mrb[0].mxu0
        %v1945 = vadd.f32 %v1872, %v1944
        %v1946 = vpop.f32.mrb[0].mxu0
        %v1947 = vadd.f32 %v1874, %v1946
        %1948 = vdwg.mxu0
        %1949 = vmatprep.subr.bf16.mxu0 %v975
        %1950 = vmatpush1.bf16.msra.mxu0 %v974
        %1951 = vmatprep.subr.bf16.mxu0 %v977
        %1952 = vmatpush1.bf16.msra.mxu0 %v976
        %1953 = vmatprep.subr.bf16.mxu0 %v979
        %1954 = vmatpush1.bf16.msra.mxu0 %v978
        %1955 = vmatprep.subr.bf16.mxu0 %v981
        %1956 = vmatpush1.bf16.msra.mxu0 %v980
        %1957 = vmatprep.subr.bf16.mxu0 %v983
        %1958 = vmatpush1.bf16.msra.mxu0 %v982
        %1959 = vmatprep.subr.bf16.mxu0 %v985
        %1960 = vmatpush1.bf16.msra.mxu0 %v984
        %1961 = vmatprep.subr.bf16.mxu0 %v987
        %1962 = vmatpush1.bf16.msra.mxu0 %v986
        %1963 = vmatprep.subr.bf16.mxu0 %v989
        %1964 = vmatpush1.bf16.msra.mxu0 %v988
        %1965 = vmatprep.subr.bf16.mxu0 %v991
        %1966 = vmatpush1.bf16.msra.mxu0 %v990
        %1967 = vmatprep.subr.bf16.mxu0 %v993
        %1968 = vmatpush1.bf16.msra.mxu0 %v992
        %1969 = vmatprep.subr.bf16.mxu0 %v995
        %1970 = vmatpush1.bf16.msra.mxu0 %v994
        %1971 = vmatprep.subr.bf16.mxu0 %v997
        %1972 = vmatpush1.bf16.msra.mxu0 %v996
        %1973 = vmatprep.subr.bf16.mxu0 %v999
        %1974 = vmatpush1.bf16.msra.mxu0 %v998
        %1975 = vmatprep.subr.bf16.mxu0 %v1001
        %1976 = vmatpush1.bf16.msra.mxu0 %v1000
        %1977 = vmatprep.subr.bf16.mxu0 %v1003
        %1978 = vmatpush1.bf16.msra.mxu0 %v1002
        %1979 = vmatprep.subr.bf16.mxu0 %v1005
        %1980 = vmatpush1.bf16.msra.mxu0 %v1004
        %1981 = vmatprep.mubr.bf16.mxu0 %v1325
        %1982 = vmatmul.mubr.bf16.gmra.mrb[0].mxu0 %v1324
        %v1983 = vpop.f32.mrb[0].mxu0
        %v1984 = vadd.f32 %v1911, %v1983
        %v1985 = vpop.f32.mrb[0].mxu0
        %v1986 = vadd.f32 %v1913, %v1985
        %v1987 = vpop.f32.mrb[0].mxu0
        %v1988 = vadd.f32 %v1915, %v1987
        %v1989 = vpop.f32.mrb[0].mxu0
        %v1990 = vadd.f32 %v1917, %v1989
        %1991 = vmatprep.mubr.bf16.mxu0 %v1341
        %1992 = vmatmul.mubr.bf16.gmra.mrb[0].mxu0 %v1340
        %v1993 = vpop.f32.mrb[0].mxu0
        %v1994 = vadd.f32 %v1921, %v1993
        %v1995 = vpop.f32.mrb[0].mxu0
        %v1996 = vadd.f32 %v1923, %v1995
        %v1997 = vpop.f32.mrb[0].mxu0
        %v1998 = vadd.f32 %v1925, %v1997
        %v1999 = vpop.f32.mrb[0].mxu0
        %v2000 = vadd.f32 %v1927, %v1999
        %2001 = vmatprep.mubr.bf16.mxu0 %v1357
        %2002 = vmatmul.mubr.bf16.gmra.mrb[0].mxu0 %v1356
        %v2003 = vpop.f32.mrb[0].mxu0
        %v2004 = vadd.f32 %v1931, %v2003
        %v2005 = vpop.f32.mrb[0].mxu0
        %v2006 = vadd.f32 %v1933, %v2005
        %v2007 = vpop.f32.mrb[0].mxu0
        %v2008 = vadd.f32 %v1935, %v2007
        %v2009 = vpop.f32.mrb[0].mxu0
        %v2010 = vadd.f32 %v1937, %v2009
        %2011 = vmatprep.mubr.bf16.mxu0 %v1373
        %2012 = vmatmul.mubr.bf16.gmra.mrb[0].mxu0 %v1372
        %v2013 = vpop.f32.mrb[0].mxu0
        %v2014 = vadd.f32 %v1941, %v2013
        %v2015 = vpop.f32.mrb[0].mxu0
        %v2016 = vadd.f32 %v1943, %v2015
        %v2017 = vpop.f32.mrb[0].mxu0
        %v2018 = vadd.f32 %v1945, %v2017
        %v2019 = vpop.f32.mrb[0].mxu0
        %v2020 = vadd.f32 %v1947, %v2019
        %2021 = vdwg.mxu0
        %2022 = vst [vmem:[%s235] sm:$0xff] %v1984
        %2023 = vst [vmem:[%s235 + $0x8] sm:$0xff] %v1986
        %2024 = vst [vmem:[%s235 + $0x10] sm:$0xff] %v1988
        %2025 = vst [vmem:[%s235 + $0x18] sm:$0xff] %v1990
        %2026 = vst [vmem:[%s235 + $0x20] sm:$0xff] %v1994
        %2027 = vst [vmem:[%s235 + $0x28] sm:$0xff] %v1996
        %2028 = vst [vmem:[%s235 + $0x30] sm:$0xff] %v1998
        %2029 = vst [vmem:[%s235 + $0x38] sm:$0xff] %v2000
        %2030 = vst [vmem:[%s235 + $0x40] sm:$0xff] %v2004
        %2031 = vst [vmem:[%s235 + $0x48] sm:$0xff] %v2006
        %2032 = vst [vmem:[%s235 + $0x50] sm:$0xff] %v2008
        %2033 = vst [vmem:[%s235 + $0x58] sm:$0xff] %v2010
        %2034 = vst [vmem:[%s235 + $0x60] sm:$0xff] %v2014
        %2035 = vst [vmem:[%s235 + $0x68] sm:$0xff] %v2016
        %2036 = vst [vmem:[%s235 + $0x70] sm:$0xff] %v2018
        %2037 = vst [vmem:[%s235 + $0x78] sm:$0xff] %v2020
        %s2038 = sand.u32 %s113, 1
        %s2039 = scalar_lea.sflag [#allocation4], %s2038
        %s2040 = sand.u32 %s113, 1
        %s2041 = smul.addr %s2040, 128
        %s2042 = scalar_lea.vmem [#allocation8], %s2041
        // Predicated region
        $region45: #{tpu_custom_call.1} parent=31 // pred_check
          %p2043 = pneg %p123
        $region46: #{tpu_custom_call.1} parent=31 // pred_check_branch
          %2045 = sbr.rel (%p2043) target = $region48
        $region47: #{tpu_custom_call.1} parent=31 // pred_region
          %s2046 = smul.u32 2, %s26
          %s2048 = ssub.s32 2048, 2048
          %2049 = vsyncadd %s2039, %s2048
          %s2050 = smul.addr %s25, 16
          %s2051 = sadd.s32 %s2046, %s2050
          %s2052 = smul.addr %s2051, 128
          %s2053 = scalar_lea.hbm %s3, %s2052
          %s2054 = sshll.u32 %s2042, 4
          %s2055 = int_to_ptr.vmem [resolvable:$true] %s2054
          %2060 = dma.vmem_to_hbm [thread:$0]  %s2055, 2048, %s2053, %s2039, 256, 256, 16
        $region48: #{tpu_custom_call.1} parent=31 // pred_fallthru
          _
      $region32: #{tpu_custom_call.1} parent=5 // pred_fallthru
        _
      %p2061 = scmp.le.s32.totalorder 2, %s16
      // Predicated region
      $region49: #{tpu_custom_call.1} parent=5 // pred_check
        %p2062 = pneg %p2061
      $region50: #{tpu_custom_call.1} parent=5 // pred_check_branch
        %2064 = sbr.rel (%p2062) target = $region52
      $region51: #{tpu_custom_call.1} parent=5 // pred_region
        %s2065 = ssub.s32 %s16, 2
        // Predicated region
        $region53: #{tpu_custom_call.1} parent=51 // pred_check
          %p2066 = pneg %p129
        $region54: #{tpu_custom_call.1} parent=51 // pred_check_branch
          %2068 = sbr.rel (%p2066) target = $region56
        $region55: #{tpu_custom_call.1} parent=51 // pred_region
          %s2069 = sand.u32 %s114, 1
          %s2070 = scalar_lea.sflag [#allocation4], %s2069
          %s2071 = sand.u32 %s114, 1
          %s2072 = smul.addr %s2071, 128
          %s2073 = scalar_lea.vmem [#allocation8], %s2072
          %2074 = dma.done %s2070, 2048
        $region56: #{tpu_custom_call.1} parent=51 // pred_fallthru
          _
      $region52: #{tpu_custom_call.1} parent=5 // pred_fallthru
        _
    $region6: #{tpu_custom_call.1} parent=1 // loop_footer
      %s20 = sadd.s32 1, %s16
    $region7: #{tpu_custom_call.1} parent=1 // loop_footer_branch
      %15 = sbr.rel target = $region3
    $region8: #{tpu_custom_call.1} parent=1 // loop_exit
      _
    %2075 = vsyncpa [#allocation3], 1
    %s2076 = scalar_lea.sflag [#allocation3], 1
    %2077 = vsyncpa %s2076, 1
    %2078 = vsyncpa [#allocation6], 1
    %2079 = vsyncpa [#allocation4], 1
    %s2080 = scalar_lea.sflag [#allocation4], 1
    %2081 = vsyncpa %s2080, 1

</llo_original>
